<compile_context>
chip_gen: v5e
topology: v5e:2x2
jax: 0.10.0
libtpu: 0.0.40
codegen_flags: <defaults>
</compile_context>

<pallas_src>
import functools
import math

import jax
import jax.numpy as jnp
from jax import lax
from jax.experimental import pallas as pl
from jax.experimental.pallas import tpu as pltpu


# ---------------------------------------------------------------------------
# In-kernel helpers (fp32 elementwise math)
# ---------------------------------------------------------------------------
def _gelu_tanh(x):
    # tanh-approx GELU: tanh lowers to the EUP (separate bundle slot), far cheaper on the
    # (S, mlp_dim) activation than a polynomial erf with an f32 divide.
    # TODO(synk): on v6e/v7x this elementwise block could run in bf16 (bf16 VALU/EUP); keep f32
    # on v5e.
    c = math.sqrt(2.0 / math.pi)
    return 0.5 * x * (1.0 + jnp.tanh(c * (x + 0.044715 * x * x * x)))


def _layernorm(x, w, b, eps=1e-6):
    mu = jnp.mean(x, axis=-1, keepdims=True)
    var = jnp.mean(jnp.square(x - mu), axis=-1, keepdims=True)
    return (x - mu) * lax.rsqrt(var + eps) * w + b


# ---------------------------------------------------------------------------
# Pallas kernel: one (S, D) sequence per grid step
# ---------------------------------------------------------------------------
def encoder_block_kernel(num_heads, mlp_chunk,
                         x_ref,
                         ln1_w, ln1_b,
                         wqkv, bqkv,            # (D, 3D) bf16 (scale folded into Q cols), (1, 3D) f32
                         wo, bo,                # (D, D)  bf16, (1, D)  f32
                         ln2_w, ln2_b,
                         w1, b1,                # (D, M)  bf16, (1, M)  f32
                         w2, b2,                # (M, D)  bf16, (1, D)  f32
                         out_ref,
                         ctx_ref,               # VMEM (S, D) bf16 scratch: per-head contexts
                         mlp_acc_ref):          # VMEM (S, D) f32 scratch: MLP accumulator
    x = x_ref[0]                                  # (S, D) f32
    S, D = x.shape
    hd = D // num_heads
    bf16 = jnp.bfloat16
    f32 = jnp.float32

    # ---- ln_1 ----
    xn = _layernorm(x, ln1_w[...], ln1_b[...])    # f32
    xn_b = xn.astype(bf16)

    # ---- fused QKV projection: one (S,D)x(D,3D) MXU op (1/sqrt(hd) pre-folded into Q) ----
    qkv = jnp.dot(xn_b, wqkv[...], preferred_element_type=f32) + bqkv[...]
    q_b = qkv[:, :D].astype(bf16)
    k_b = qkv[:, D:2 * D].astype(bf16)
    v_b = qkv[:, 2 * D:].astype(bf16)

    # ---- per-head attention; contexts written column-wise into VMEM scratch ----
    for h in range(num_heads):                    # static unrolled loop over heads
        lo = h * hd
        qh = q_b[:, lo:lo + hd]
        kh = k_b[:, lo:lo + hd]
        vh = v_b[:, lo:lo + hd]
        # scores = qh @ kh^T without an explicit transpose (contract last dims of both)
        s = lax.dot_general(qh, kh, (((1,), (1,)), ((), ())),
                            preferred_element_type=f32)            # (S, S) f32
        s = s - jnp.max(s, axis=-1, keepdims=True)
        p = jnp.exp(s)
        denom = jnp.sum(p, axis=-1, keepdims=True)                  # (S, 1)
        ctx = jnp.dot(p.astype(bf16), vh, preferred_element_type=f32)   # (S, hd)
        # fold softmax normalization into ctx: (S, hd) multiply instead of (S, S)
        ctx = ctx * pl.reciprocal(denom, approx=True)               # EUP reciprocal
        ctx_ref[:, lo:lo + hd] = ctx.astype(bf16)

    # ---- single full-depth (K=D) output projection ----
    attn = jnp.dot(ctx_ref[...], wo[...], preferred_element_type=f32) + bo[...]

    # dropout: identity in eval mode
    x2 = x + attn                                 # residual 1

    # ---- ln_2 + MLP (chunked over mlp_dim, accumulating into VMEM scratch) ----
    yn = _layernorm(x2, ln2_w[...], ln2_b[...])
    yn_b = yn.astype(bf16)
    M = w1.shape[1]
    mlp_acc_ref[...] = jnp.zeros_like(mlp_acc_ref)
    for c in range(0, M, mlp_chunk):              # static chunk loop
        cs = min(mlp_chunk, M - c)
        h1c = jnp.dot(yn_b, w1[:, c:c + cs], preferred_element_type=f32) + b1[:, c:c + cs]
        g = _gelu_tanh(h1c)                       # f32 elementwise, tanh on EUP
        mlp_acc_ref[...] += jnp.dot(g.astype(bf16), w2[c:c + cs, :],
                                    preferred_element_type=f32)

    out_ref[0] = (x2 + mlp_acc_ref[...] + b2[...]).astype(out_ref.dtype)   # residual 2


# ---------------------------------------------------------------------------
# Wrapper: packs/pre-transposes/pre-scales weights, casts to bf16, builds BlockSpecs
# ---------------------------------------------------------------------------
def _vmem_limit_bytes():
    # Generation-aware VMEM limit: ~85% of per-TC capacity, capped at 100 MiB.
    # (v5e/v6e: 128 MiB physical -> 100 MiB; v7x: 64 MiB physical -> ~54 MiB, leaving headroom.)
    try:
        cap = pltpu.get_tpu_info().vmem_capacity_bytes
    except Exception:
        return 64 * 1024 * 1024
    return min(int(0.85 * cap), 100 * 1024 * 1024)


def encoder_block(x, params, num_heads, mlp_chunk=1024):
    B, S, D = x.shape
    M = params["w1"].shape[0]
    hd = D // num_heads
    scale = 1.0 / math.sqrt(hd)
    bf16 = jnp.bfloat16
    f32 = jnp.float32

    # Packed QKV weight, (in=D, out=3D) layout; 1/sqrt(hd) folded into Q weight AND bias.
    wq_s = params["wq"] * scale
    bq_s = params["bq"] * scale
    wqkv_t = jnp.concatenate([wq_s, params["wk"], params["wv"]], axis=0).T.astype(bf16)
    bqkv = jnp.concatenate([bq_s, params["bk"], params["bv"]], axis=-1).astype(f32)
    wo_t = params["wo"].T.astype(bf16)            # (D, D)
    w1_t = params["w1"].T.astype(bf16)            # (D, M)
    w2_t = params["w2"].T.astype(bf16)            # (M, D)

    def rep(shape):
        # Grid-invariant (replicated) operand: DMA'd once, single-buffered to halve its VMEM
        # footprint (it never changes across grid steps, so double-buffering buys nothing).
        nd = len(shape)
        return pl.BlockSpec(shape, lambda b, nd=nd: (0,) * nd,
                            pipeline_mode=pl.Buffered(1))

    in_specs = [
        pl.BlockSpec((1, S, D), lambda b: (b, 0, 0)),   # x (double-buffered by default)
        rep((1, D)), rep((1, D)),                       # ln1 w, b
        rep((D, 3 * D)), rep((1, 3 * D)),               # Wqkv, bqkv
        rep((D, D)), rep((1, D)),                       # Wo^T, bo
        rep((1, D)), rep((1, D)),                       # ln2 w, b
        rep((D, M)), rep((1, M)),                       # W1^T, b1
        rep((M, D)), rep((1, D)),                       # W2^T, b2
    ]
    # TODO(synk): at ViT-L/H scale on v7x, tile W1/W2 over mlp_dim via a trailing "arbitrary"
    # grid axis (streamed, pipelined) instead of holding the full slabs resident, and add a
    # second "parallel" grid axis over query tiles so both TensorCores stay fed at small B.
    # TODO(synk): for multi-layer stacks, prefetch the next layer's packed weights across
    # pallas_call boundaries (cross-call DMA futures) to hide the one-time weight load.

    kernel = functools.partial(encoder_block_kernel, num_heads, min(mlp_chunk, M))
    return pl.pallas_call(
        kernel,
        out_shape=jax.ShapeDtypeStruct((B, S, D), x.dtype),
        grid=(B,),
        in_specs=in_specs,
        out_specs=pl.BlockSpec((1, S, D), lambda b: (b, 0, 0)),
        scratch_shapes=[
            pltpu.VMEM((S, D), bf16),                   # per-head context slab
            pltpu.VMEM((S, D), f32),                    # MLP accumulator
        ],
        compiler_params=pltpu.CompilerParams(
            dimension_semantics=("parallel",),          # shard batch across TCs on v7x
            vmem_limit_bytes=_vmem_limit_bytes(),
        ),
    )(x,
      params["ln1_w"], params["ln1_b"],
      wqkv_t, bqkv,
      wo_t, params["bo"],
      params["ln2_w"], params["ln2_b"],
      w1_t, params["b1"],
      w2_t, params["b2"])


# ---------------------------------------------------------------------------
# Numerics-matched pure-JAX reference (bf16 matmul inputs, fp32 accumulation, exact-erf GELU)
# ---------------------------------------------------------------------------
def reference(x, params, num_heads):
    B, S, D = x.shape
    hd = D // num_heads
    bf16, f32 = jnp.bfloat16, jnp.float32

    def mm(a, b):
        return jnp.dot(a.astype(bf16), b.astype(bf16), preferred_element_type=f32)

    def ln(t, w, b):
        mu = t.mean(-1, keepdims=True)
        var = ((t - mu) ** 2).mean(-1, keepdims=True)
        return (t - mu) / jnp.sqrt(var + 1e-6) * w + b

    xn = ln(x, params["ln1_w"][0], params["ln1_b"][0])
    wqkv_t = jnp.concatenate([params["wq"], params["wk"], params["wv"]], axis=0).T
    bqkv = jnp.concatenate([params["bq"], params["bk"], params["bv"]], axis=-1)[0]
    qkv = mm(xn, wqkv_t) + bqkv
    q = qkv[..., :D] / math.sqrt(hd)
    k = qkv[..., D:2 * D]
    v = qkv[..., 2 * D:]

    def heads(t):
        return t.reshape(B, S, num_heads, hd).transpose(0, 2, 1, 3)

    qh, kh, vh = heads(q), heads(k), heads(v)
    s = jnp.einsum("bhqd,bhkd->bhqk", qh.astype(bf16), kh.astype(bf16),
                   preferred_element_type=f32)
    p = jax.nn.softmax(s, axis=-1)
    o = jnp.einsum("bhqk,bhkd->bhqd", p.astype(bf16), vh.astype(bf16),
                   preferred_element_type=f32)
    o = o.transpose(0, 2, 1, 3).reshape(B, S, D)
    o = mm(o, params["wo"].T) + params["bo"][0]
    x2 = x + o

    yn = ln(x2, params["ln2_w"][0], params["ln2_b"][0])
    h1 = mm(yn, params["w1"].T) + params["b1"][0]
    g = jax.nn.gelu(h1, approximate=False)        # exact erf (PyTorch nn.GELU default)
    h2 = mm(g, params["w2"].T) + params["b2"][0]
    return x2 + h2


# ---------------------------------------------------------------------------
# Deterministic parameter construction (same shapes / init scheme as PyTorch)
# ---------------------------------------------------------------------------
def make_params(key, hidden_dim, mlp_dim):
    D, M = hidden_dim, mlp_dim
    keys = jax.random.split(key, 12)

    def xavier(k, shape):
        fan_out, fan_in = shape
        lim = math.sqrt(6.0 / (fan_in + fan_out))
        return jax.random.uniform(k, shape, jnp.float32, -lim, lim)

    return {
        "ln1_w": 1.0 + 0.05 * jax.random.normal(keys[0], (1, D), jnp.float32),
        "ln1_b": 0.05 * jax.random.normal(keys[1], (1, D), jnp.float32),
        "ln2_w": 1.0 + 0.05 * jax.random.normal(keys[2], (1, D), jnp.float32),
        "ln2_b": 0.05 * jax.random.normal(keys[3], (1, D), jnp.float32),
        "wq": xavier(keys[4], (D, D)),
        "wk": xavier(keys[5], (D, D)),
        "wv": xavier(keys[6], (D, D)),
        "bq": jnp.zeros((1, D), jnp.float32),
        "bk": jnp.zeros((1, D), jnp.float32),
        "bv": jnp.zeros((1, D), jnp.float32),
        "wo": xavier(keys[7], (D, D)),
        "bo": jnp.zeros((1, D), jnp.float32),
        "w1": xavier(keys[8], (M, D)),
        "b1": 1e-6 * jax.random.normal(keys[9], (1, M), jnp.float32),
        "w2": xavier(keys[10], (D, M)),
        "b2": 1e-6 * jax.random.normal(keys[11], (1, D), jnp.float32),
    }


if __name__ == "__main__":
    B, S, D, H, M = 2, 8, 32, 4, 64
    key = jax.random.PRNGKey(0)
    k_x, k_p = jax.random.split(key)

    x = jax.random.normal(k_x, (B, S, D), jnp.float32)
    params = make_params(k_p, D, M)

    out = encoder_block(x, params, num_heads=H)
    out = jax.block_until_ready(out)

    ref = reference(x, params, num_heads=H)
    assert out.shape == (B, S, D)
    assert jnp.allclose(out, ref, atol=3e-2, rtol=3e-2), (
        f"max abs diff {jnp.max(jnp.abs(out - ref))}"
    )
    print("KERNEL_OK")
</pallas_src>

<mosaic_0001>
module attributes {stable_mosaic.version = 11 : i64} {
  func.func @encoder_block_kernel(%arg0: i32, %arg1: memref<1x8x32xf32, #tpu.memory_space<vmem>>, %arg2: memref<1x32xf32, #tpu.memory_space<vmem>>, %arg3: memref<1x32xf32, #tpu.memory_space<vmem>>, %arg4: memref<32x96xbf16, #tpu.memory_space<vmem>>, %arg5: memref<1x96xf32, #tpu.memory_space<vmem>>, %arg6: memref<32x32xbf16, #tpu.memory_space<vmem>>, %arg7: memref<1x32xf32, #tpu.memory_space<vmem>>, %arg8: memref<1x32xf32, #tpu.memory_space<vmem>>, %arg9: memref<1x32xf32, #tpu.memory_space<vmem>>, %arg10: memref<32x64xbf16, #tpu.memory_space<vmem>>, %arg11: memref<1x64xf32, #tpu.memory_space<vmem>>, %arg12: memref<64x32xbf16, #tpu.memory_space<vmem>>, %arg13: memref<1x32xf32, #tpu.memory_space<vmem>>, %arg14: memref<1x8x32xf32, #tpu.memory_space<vmem>>, %arg15: memref<8x32xbf16, #tpu.memory_space<vmem>>, %arg16: memref<8x32xf32, #tpu.memory_space<vmem>>) attributes {dimension_semantics = [#tpu.dimension_semantics<parallel>], iteration_bounds = array<i64: 2>, scalar_prefetch = 0 : i64, scratch_operands = 2 : i64, tpu.core_type = #tpu.core_type<tc>, window_params = [{transform_indices = @transform_0, window_bounds = array<i64: 1, 8, 32>}, {pipeline_mode = #tpu.pipeline_mode<synchronous>, transform_indices = @transform_1, window_bounds = array<i64: 1, 32>}, {pipeline_mode = #tpu.pipeline_mode<synchronous>, transform_indices = @transform_2, window_bounds = array<i64: 1, 32>}, {pipeline_mode = #tpu.pipeline_mode<synchronous>, transform_indices = @transform_3, window_bounds = array<i64: 32, 96>}, {pipeline_mode = #tpu.pipeline_mode<synchronous>, transform_indices = @transform_4, window_bounds = array<i64: 1, 96>}, {pipeline_mode = #tpu.pipeline_mode<synchronous>, transform_indices = @transform_5, window_bounds = array<i64: 32, 32>}, {pipeline_mode = #tpu.pipeline_mode<synchronous>, transform_indices = @transform_6, window_bounds = array<i64: 1, 32>}, {pipeline_mode = #tpu.pipeline_mode<synchronous>, transform_indices = @transform_7, window_bounds = array<i64: 1, 32>}, {pipeline_mode = #tpu.pipeline_mode<synchronous>, transform_indices = @transform_8, window_bounds = array<i64: 1, 32>}, {pipeline_mode = #tpu.pipeline_mode<synchronous>, transform_indices = @transform_9, window_bounds = array<i64: 32, 64>}, {pipeline_mode = #tpu.pipeline_mode<synchronous>, transform_indices = @transform_10, window_bounds = array<i64: 1, 64>}, {pipeline_mode = #tpu.pipeline_mode<synchronous>, transform_indices = @transform_11, window_bounds = array<i64: 64, 32>}, {pipeline_mode = #tpu.pipeline_mode<synchronous>, transform_indices = @transform_12, window_bounds = array<i64: 1, 32>}, {transform_indices = @transform_13, window_bounds = array<i64: 1, 8, 32>}]} {
    %c0 = arith.constant 0 : index
    %c0_0 = arith.constant 0 : index
    %c0_1 = arith.constant 0 : index
    %0 = vector.load %arg1[%c0, %c0_0, %c0_1] : memref<1x8x32xf32, #tpu.memory_space<vmem>>, vector<1x8x32xf32>
    %1 = vector.shape_cast %0 : vector<1x8x32xf32> to vector<8x32xf32>
    %c0_2 = arith.constant 0 : index
    %c0_3 = arith.constant 0 : index
    %2 = vector.load %arg2[%c0_2, %c0_3] : memref<1x32xf32, #tpu.memory_space<vmem>>, vector<1x32xf32>
    %c0_4 = arith.constant 0 : index
    %c0_5 = arith.constant 0 : index
    %3 = vector.load %arg3[%c0_4, %c0_5] : memref<1x32xf32, #tpu.memory_space<vmem>>, vector<1x32xf32>
    %cst = arith.constant dense<0.000000e+00> : vector<8xf32>
    %4 = vector.multi_reduction <add>, %1, %cst [1] : vector<8x32xf32> to vector<8xf32>
    %5 = vector.shape_cast %4 : vector<8xf32> to vector<8x1xf32>
    %cst_6 = arith.constant 3.200000e+01 : f32
    %6 = vector.broadcast %cst_6 : f32 to vector<8x1xf32>
    %7 = arith.divf %5, %6 : vector<8x1xf32>
    %8 = vector.broadcast %7 : vector<8x1xf32> to vector<8x32xf32>
    %9 = arith.subf %1, %8 : vector<8x32xf32>
    %10 = arith.mulf %9, %9 : vector<8x32xf32>
    %cst_7 = arith.constant dense<0.000000e+00> : vector<8xf32>
    %11 = vector.multi_reduction <add>, %10, %cst_7 [1] : vector<8x32xf32> to vector<8xf32>
    %12 = vector.shape_cast %11 : vector<8xf32> to vector<8x1xf32>
    %cst_8 = arith.constant 3.200000e+01 : f32
    %13 = vector.broadcast %cst_8 : f32 to vector<8x1xf32>
    %14 = arith.divf %12, %13 : vector<8x1xf32>
    %15 = vector.broadcast %7 : vector<8x1xf32> to vector<8x32xf32>
    %16 = arith.subf %1, %15 : vector<8x32xf32>
    %cst_9 = arith.constant 9.99999997E-7 : f32
    %17 = vector.broadcast %cst_9 : f32 to vector<8x1xf32>
    %18 = arith.addf %14, %17 : vector<8x1xf32>
    %19 = math.rsqrt %18 : vector<8x1xf32>
    %20 = vector.broadcast %19 : vector<8x1xf32> to vector<8x32xf32>
    %21 = arith.mulf %16, %20 : vector<8x32xf32>
    %22 = vector.broadcast %2 : vector<1x32xf32> to vector<8x32xf32>
    %23 = arith.mulf %21, %22 : vector<8x32xf32>
    %24 = vector.broadcast %3 : vector<1x32xf32> to vector<8x32xf32>
    %25 = arith.addf %23, %24 : vector<8x32xf32>
    %26 = arith.truncf %25 : vector<8x32xf32> to vector<8x32xbf16>
    %c0_10 = arith.constant 0 : index
    %c0_11 = arith.constant 0 : index
    %27 = vector.load %arg4[%c0_10, %c0_11] : memref<32x96xbf16, #tpu.memory_space<vmem>>, vector<32x96xbf16>
    %cst_12 = arith.constant dense<0.000000e+00> : vector<8x96xf32>
    %28 = tpu.matmul %26, %27, %cst_12 {dimension_numbers = #tpu.dot_dimension_numbers<[1], [0], [0], [1], [0, 0, 1, 1], [], []>} : vector<8x32xbf16>, vector<32x96xbf16>, vector<8x96xf32> -> vector<8x96xf32>
    %c0_13 = arith.constant 0 : index
    %c0_14 = arith.constant 0 : index
    %29 = vector.load %arg5[%c0_13, %c0_14] : memref<1x96xf32, #tpu.memory_space<vmem>>, vector<1x96xf32>
    %30 = vector.broadcast %29 : vector<1x96xf32> to vector<8x96xf32>
    %31 = arith.addf %28, %30 : vector<8x96xf32>
    %32 = vector.extract_strided_slice %31 {offsets = [0, 0], sizes = [8, 32], strides = [1, 1]} : vector<8x96xf32> to vector<8x32xf32>
    %33 = arith.truncf %32 : vector<8x32xf32> to vector<8x32xbf16>
    %34 = vector.extract_strided_slice %31 {offsets = [0, 32], sizes = [8, 32], strides = [1, 1]} : vector<8x96xf32> to vector<8x32xf32>
    %35 = arith.truncf %34 : vector<8x32xf32> to vector<8x32xbf16>
    %36 = vector.extract_strided_slice %31 {offsets = [0, 64], sizes = [8, 32], strides = [1, 1]} : vector<8x96xf32> to vector<8x32xf32>
    %37 = arith.truncf %36 : vector<8x32xf32> to vector<8x32xbf16>
    %38 = vector.extract_strided_slice %33 {offsets = [0, 0], sizes = [8, 8], strides = [1, 1]} : vector<8x32xbf16> to vector<8x8xbf16>
    %39 = vector.extract_strided_slice %35 {offsets = [0, 0], sizes = [8, 8], strides = [1, 1]} : vector<8x32xbf16> to vector<8x8xbf16>
    %40 = vector.extract_strided_slice %37 {offsets = [0, 0], sizes = [8, 8], strides = [1, 1]} : vector<8x32xbf16> to vector<8x8xbf16>
    %cst_15 = arith.constant dense<0.000000e+00> : vector<8x8xf32>
    %41 = tpu.matmul %38, %39, %cst_15 {dimension_numbers = #tpu.dot_dimension_numbers<[1], [1], [0], [0], [0, 0, 1, 0], [], []>} : vector<8x8xbf16>, vector<8x8xbf16>, vector<8x8xf32> -> vector<8x8xf32>
    %cst_16 = arith.constant dense<0xFF800000> : vector<8xf32>
    %42 = vector.multi_reduction <maximumf>, %41, %cst_16 [1] : vector<8x8xf32> to vector<8xf32>
    %43 = vector.shape_cast %42 : vector<8xf32> to vector<8x1xf32>
    %44 = vector.broadcast %43 : vector<8x1xf32> to vector<8x8xf32>
    %45 = arith.subf %41, %44 : vector<8x8xf32>
    %46 = math.exp %45 : vector<8x8xf32>
    %cst_17 = arith.constant dense<0.000000e+00> : vector<8xf32>
    %47 = vector.multi_reduction <add>, %46, %cst_17 [1] : vector<8x8xf32> to vector<8xf32>
    %48 = vector.shape_cast %47 : vector<8xf32> to vector<8x1xf32>
    %49 = arith.truncf %46 : vector<8x8xf32> to vector<8x8xbf16>
    %cst_18 = arith.constant dense<0.000000e+00> : vector<8x8xf32>
    %50 = tpu.matmul %49, %40, %cst_18 {dimension_numbers = #tpu.dot_dimension_numbers<[1], [0], [0], [1], [0, 0, 1, 1], [], []>} : vector<8x8xbf16>, vector<8x8xbf16>, vector<8x8xf32> -> vector<8x8xf32>
    %51 = tpu.reciprocal %48 {approx = true} : vector<8x1xf32> -> vector<8x1xf32>
    %52 = vector.broadcast %51 : vector<8x1xf32> to vector<8x8xf32>
    %53 = arith.mulf %50, %52 : vector<8x8xf32>
    %54 = arith.truncf %53 : vector<8x8xf32> to vector<8x8xbf16>
    %c0_19 = arith.constant 0 : index
    %c0_20 = arith.constant 0 : index
    %55 = vector.load %arg15[%c0_19, %c0_20] : memref<8x32xbf16, #tpu.memory_space<vmem>>, vector<8x8xbf16>
    tpu.vector_store %arg15[%c0_19, %c0_20], %54 {strides = array<i32>} : memref<8x32xbf16, #tpu.memory_space<vmem>>, vector<8x8xbf16>,
    %56 = vector.extract_strided_slice %33 {offsets = [0, 8], sizes = [8, 8], strides = [1, 1]} : vector<8x32xbf16> to vector<8x8xbf16>
    %57 = vector.extract_strided_slice %35 {offsets = [0, 8], sizes = [8, 8], strides = [1, 1]} : vector<8x32xbf16> to vector<8x8xbf16>
    %58 = vector.extract_strided_slice %37 {offsets = [0, 8], sizes = [8, 8], strides = [1, 1]} : vector<8x32xbf16> to vector<8x8xbf16>
    %cst_21 = arith.constant dense<0.000000e+00> : vector<8x8xf32>
    %59 = tpu.matmul %56, %57, %cst_21 {dimension_numbers = #tpu.dot_dimension_numbers<[1], [1], [0], [0], [0, 0, 1, 0], [], []>} : vector<8x8xbf16>, vector<8x8xbf16>, vector<8x8xf32> -> vector<8x8xf32>
    %cst_22 = arith.constant dense<0xFF800000> : vector<8xf32>
    %60 = vector.multi_reduction <maximumf>, %59, %cst_22 [1] : vector<8x8xf32> to vector<8xf32>
    %61 = vector.shape_cast %60 : vector<8xf32> to vector<8x1xf32>
    %62 = vector.broadcast %61 : vector<8x1xf32> to vector<8x8xf32>
    %63 = arith.subf %59, %62 : vector<8x8xf32>
    %64 = math.exp %63 : vector<8x8xf32>
    %cst_23 = arith.constant dense<0.000000e+00> : vector<8xf32>
    %65 = vector.multi_reduction <add>, %64, %cst_23 [1] : vector<8x8xf32> to vector<8xf32>
    %66 = vector.shape_cast %65 : vector<8xf32> to vector<8x1xf32>
    %67 = arith.truncf %64 : vector<8x8xf32> to vector<8x8xbf16>
    %cst_24 = arith.constant dense<0.000000e+00> : vector<8x8xf32>
    %68 = tpu.matmul %67, %58, %cst_24 {dimension_numbers = #tpu.dot_dimension_numbers<[1], [0], [0], [1], [0, 0, 1, 1], [], []>} : vector<8x8xbf16>, vector<8x8xbf16>, vector<8x8xf32> -> vector<8x8xf32>
    %69 = tpu.reciprocal %66 {approx = true} : vector<8x1xf32> -> vector<8x1xf32>
    %70 = vector.broadcast %69 : vector<8x1xf32> to vector<8x8xf32>
    %71 = arith.mulf %68, %70 : vector<8x8xf32>
    %72 = arith.truncf %71 : vector<8x8xf32> to vector<8x8xbf16>
    %c0_25 = arith.constant 0 : index
    %c8 = arith.constant 8 : index
    %73 = vector.load %arg15[%c0_25, %c8] : memref<8x32xbf16, #tpu.memory_space<vmem>>, vector<8x8xbf16>
    tpu.vector_store %arg15[%c0_25, %c8], %72 {strides = array<i32>} : memref<8x32xbf16, #tpu.memory_space<vmem>>, vector<8x8xbf16>,
    %74 = vector.extract_strided_slice %33 {offsets = [0, 16], sizes = [8, 8], strides = [1, 1]} : vector<8x32xbf16> to vector<8x8xbf16>
    %75 = vector.extract_strided_slice %35 {offsets = [0, 16], sizes = [8, 8], strides = [1, 1]} : vector<8x32xbf16> to vector<8x8xbf16>
    %76 = vector.extract_strided_slice %37 {offsets = [0, 16], sizes = [8, 8], strides = [1, 1]} : vector<8x32xbf16> to vector<8x8xbf16>
    %cst_26 = arith.constant dense<0.000000e+00> : vector<8x8xf32>
    %77 = tpu.matmul %74, %75, %cst_26 {dimension_numbers = #tpu.dot_dimension_numbers<[1], [1], [0], [0], [0, 0, 1, 0], [], []>} : vector<8x8xbf16>, vector<8x8xbf16>, vector<8x8xf32> -> vector<8x8xf32>
    %cst_27 = arith.constant dense<0xFF800000> : vector<8xf32>
    %78 = vector.multi_reduction <maximumf>, %77, %cst_27 [1] : vector<8x8xf32> to vector<8xf32>
    %79 = vector.shape_cast %78 : vector<8xf32> to vector<8x1xf32>
    %80 = vector.broadcast %79 : vector<8x1xf32> to vector<8x8xf32>
    %81 = arith.subf %77, %80 : vector<8x8xf32>
    %82 = math.exp %81 : vector<8x8xf32>
    %cst_28 = arith.constant dense<0.000000e+00> : vector<8xf32>
    %83 = vector.multi_reduction <add>, %82, %cst_28 [1] : vector<8x8xf32> to vector<8xf32>
    %84 = vector.shape_cast %83 : vector<8xf32> to vector<8x1xf32>
    %85 = arith.truncf %82 : vector<8x8xf32> to vector<8x8xbf16>
    %cst_29 = arith.constant dense<0.000000e+00> : vector<8x8xf32>
    %86 = tpu.matmul %85, %76, %cst_29 {dimension_numbers = #tpu.dot_dimension_numbers<[1], [0], [0], [1], [0, 0, 1, 1], [], []>} : vector<8x8xbf16>, vector<8x8xbf16>, vector<8x8xf32> -> vector<8x8xf32>
    %87 = tpu.reciprocal %84 {approx = true} : vector<8x1xf32> -> vector<8x1xf32>
    %88 = vector.broadcast %87 : vector<8x1xf32> to vector<8x8xf32>
    %89 = arith.mulf %86, %88 : vector<8x8xf32>
    %90 = arith.truncf %89 : vector<8x8xf32> to vector<8x8xbf16>
    %c0_30 = arith.constant 0 : index
    %c16 = arith.constant 16 : index
    %91 = vector.load %arg15[%c0_30, %c16] : memref<8x32xbf16, #tpu.memory_space<vmem>>, vector<8x8xbf16>
    tpu.vector_store %arg15[%c0_30, %c16], %90 {strides = array<i32>} : memref<8x32xbf16, #tpu.memory_space<vmem>>, vector<8x8xbf16>,
    %92 = vector.extract_strided_slice %33 {offsets = [0, 24], sizes = [8, 8], strides = [1, 1]} : vector<8x32xbf16> to vector<8x8xbf16>
    %93 = vector.extract_strided_slice %35 {offsets = [0, 24], sizes = [8, 8], strides = [1, 1]} : vector<8x32xbf16> to vector<8x8xbf16>
    %94 = vector.extract_strided_slice %37 {offsets = [0, 24], sizes = [8, 8], strides = [1, 1]} : vector<8x32xbf16> to vector<8x8xbf16>
    %cst_31 = arith.constant dense<0.000000e+00> : vector<8x8xf32>
    %95 = tpu.matmul %92, %93, %cst_31 {dimension_numbers = #tpu.dot_dimension_numbers<[1], [1], [0], [0], [0, 0, 1, 0], [], []>} : vector<8x8xbf16>, vector<8x8xbf16>, vector<8x8xf32> -> vector<8x8xf32>
    %cst_32 = arith.constant dense<0xFF800000> : vector<8xf32>
    %96 = vector.multi_reduction <maximumf>, %95, %cst_32 [1] : vector<8x8xf32> to vector<8xf32>
    %97 = vector.shape_cast %96 : vector<8xf32> to vector<8x1xf32>
    %98 = vector.broadcast %97 : vector<8x1xf32> to vector<8x8xf32>
    %99 = arith.subf %95, %98 : vector<8x8xf32>
    %100 = math.exp %99 : vector<8x8xf32>
    %cst_33 = arith.constant dense<0.000000e+00> : vector<8xf32>
    %101 = vector.multi_reduction <add>, %100, %cst_33 [1] : vector<8x8xf32> to vector<8xf32>
    %102 = vector.shape_cast %101 : vector<8xf32> to vector<8x1xf32>
    %103 = arith.truncf %100 : vector<8x8xf32> to vector<8x8xbf16>
    %cst_34 = arith.constant dense<0.000000e+00> : vector<8x8xf32>
    %104 = tpu.matmul %103, %94, %cst_34 {dimension_numbers = #tpu.dot_dimension_numbers<[1], [0], [0], [1], [0, 0, 1, 1], [], []>} : vector<8x8xbf16>, vector<8x8xbf16>, vector<8x8xf32> -> vector<8x8xf32>
    %105 = tpu.reciprocal %102 {approx = true} : vector<8x1xf32> -> vector<8x1xf32>
    %106 = vector.broadcast %105 : vector<8x1xf32> to vector<8x8xf32>
    %107 = arith.mulf %104, %106 : vector<8x8xf32>
    %108 = arith.truncf %107 : vector<8x8xf32> to vector<8x8xbf16>
    %c0_35 = arith.constant 0 : index
    %c24 = arith.constant 24 : index
    %109 = vector.load %arg15[%c0_35, %c24] : memref<8x32xbf16, #tpu.memory_space<vmem>>, vector<8x8xbf16>
    tpu.vector_store %arg15[%c0_35, %c24], %108 {strides = array<i32>} : memref<8x32xbf16, #tpu.memory_space<vmem>>, vector<8x8xbf16>,
    %c0_36 = arith.constant 0 : index
    %c0_37 = arith.constant 0 : index
    %110 = vector.load %arg15[%c0_36, %c0_37] : memref<8x32xbf16, #tpu.memory_space<vmem>>, vector<8x32xbf16>
    %c0_38 = arith.constant 0 : index
    %c0_39 = arith.constant 0 : index
    %111 = vector.load %arg6[%c0_38, %c0_39] : memref<32x32xbf16, #tpu.memory_space<vmem>>, vector<32x32xbf16>
    %cst_40 = arith.constant dense<0.000000e+00> : vector<8x32xf32>
    %112 = tpu.matmul %110, %111, %cst_40 {dimension_numbers = #tpu.dot_dimension_numbers<[1], [0], [0], [1], [0, 0, 1, 1], [], []>} : vector<8x32xbf16>, vector<32x32xbf16>, vector<8x32xf32> -> vector<8x32xf32>
    %c0_41 = arith.constant 0 : index
    %c0_42 = arith.constant 0 : index
    %113 = vector.load %arg7[%c0_41, %c0_42] : memref<1x32xf32, #tpu.memory_space<vmem>>, vector<1x32xf32>
    %114 = vector.broadcast %113 : vector<1x32xf32> to vector<8x32xf32>
    %115 = arith.addf %112, %114 : vector<8x32xf32>
    %116 = arith.addf %1, %115 : vector<8x32xf32>
    %c0_43 = arith.constant 0 : index
    %c0_44 = arith.constant 0 : index
    %117 = vector.load %arg8[%c0_43, %c0_44] : memref<1x32xf32, #tpu.memory_space<vmem>>, vector<1x32xf32>
    %c0_45 = arith.constant 0 : index
    %c0_46 = arith.constant 0 : index
    %118 = vector.load %arg9[%c0_45, %c0_46] : memref<1x32xf32, #tpu.memory_space<vmem>>, vector<1x32xf32>
    %cst_47 = arith.constant dense<0.000000e+00> : vector<8xf32>
    %119 = vector.multi_reduction <add>, %116, %cst_47 [1] : vector<8x32xf32> to vector<8xf32>
    %120 = vector.shape_cast %119 : vector<8xf32> to vector<8x1xf32>
    %cst_48 = arith.constant 3.200000e+01 : f32
    %121 = vector.broadcast %cst_48 : f32 to vector<8x1xf32>
    %122 = arith.divf %120, %121 : vector<8x1xf32>
    %123 = vector.broadcast %122 : vector<8x1xf32> to vector<8x32xf32>
    %124 = arith.subf %116, %123 : vector<8x32xf32>
    %125 = arith.mulf %124, %124 : vector<8x32xf32>
    %cst_49 = arith.constant dense<0.000000e+00> : vector<8xf32>
    %126 = vector.multi_reduction <add>, %125, %cst_49 [1] : vector<8x32xf32> to vector<8xf32>
    %127 = vector.shape_cast %126 : vector<8xf32> to vector<8x1xf32>
    %cst_50 = arith.constant 3.200000e+01 : f32
    %128 = vector.broadcast %cst_50 : f32 to vector<8x1xf32>
    %129 = arith.divf %127, %128 : vector<8x1xf32>
    %130 = vector.broadcast %122 : vector<8x1xf32> to vector<8x32xf32>
    %131 = arith.subf %116, %130 : vector<8x32xf32>
    %cst_51 = arith.constant 9.99999997E-7 : f32
    %132 = vector.broadcast %cst_51 : f32 to vector<8x1xf32>
    %133 = arith.addf %129, %132 : vector<8x1xf32>
    %134 = math.rsqrt %133 : vector<8x1xf32>
    %135 = vector.broadcast %134 : vector<8x1xf32> to vector<8x32xf32>
    %136 = arith.mulf %131, %135 : vector<8x32xf32>
    %137 = vector.broadcast %117 : vector<1x32xf32> to vector<8x32xf32>
    %138 = arith.mulf %136, %137 : vector<8x32xf32>
    %139 = vector.broadcast %118 : vector<1x32xf32> to vector<8x32xf32>
    %140 = arith.addf %138, %139 : vector<8x32xf32>
    %141 = arith.truncf %140 : vector<8x32xf32> to vector<8x32xbf16>
    %cst_52 = arith.constant 0.000000e+00 : f32
    %142 = vector.broadcast %cst_52 : f32 to vector<8x32xf32>
    %c0_53 = arith.constant 0 : index
    %c0_54 = arith.constant 0 : index
    %143 = vector.load %arg16[%c0_53, %c0_54] : memref<8x32xf32, #tpu.memory_space<vmem>>, vector<8x32xf32>
    tpu.vector_store %arg16[%c0_53, %c0_54], %142 {strides = array<i32>} : memref<8x32xf32, #tpu.memory_space<vmem>>, vector<8x32xf32>,
    %c0_55 = arith.constant 0 : index
    %c0_56 = arith.constant 0 : index
    %144 = vector.load %arg10[%c0_55, %c0_56] : memref<32x64xbf16, #tpu.memory_space<vmem>>, vector<32x64xbf16>
    %cst_57 = arith.constant dense<0.000000e+00> : vector<8x64xf32>
    %145 = tpu.matmul %141, %144, %cst_57 {dimension_numbers = #tpu.dot_dimension_numbers<[1], [0], [0], [1], [0, 0, 1, 1], [], []>} : vector<8x32xbf16>, vector<32x64xbf16>, vector<8x64xf32> -> vector<8x64xf32>
    %c0_58 = arith.constant 0 : index
    %c0_59 = arith.constant 0 : index
    %146 = vector.load %arg11[%c0_58, %c0_59] : memref<1x64xf32, #tpu.memory_space<vmem>>, vector<1x64xf32>
    %147 = vector.broadcast %146 : vector<1x64xf32> to vector<8x64xf32>
    %148 = arith.addf %145, %147 : vector<8x64xf32>
    %cst_60 = arith.constant 5.000000e-01 : f32
    %149 = vector.broadcast %cst_60 : f32 to vector<8x64xf32>
    %150 = arith.mulf %149, %148 : vector<8x64xf32>
    %cst_61 = arith.constant 4.471500e-02 : f32
    %151 = vector.broadcast %cst_61 : f32 to vector<8x64xf32>
    %152 = arith.mulf %151, %148 : vector<8x64xf32>
    %153 = arith.mulf %152, %148 : vector<8x64xf32>
    %154 = arith.mulf %153, %148 : vector<8x64xf32>
    %155 = arith.addf %148, %154 : vector<8x64xf32>
    %cst_62 = arith.constant 0.797884583 : f32
    %156 = vector.broadcast %cst_62 : f32 to vector<8x64xf32>
    %157 = arith.mulf %156, %155 : vector<8x64xf32>
    %158 = math.tanh %157 : vector<8x64xf32>
    %cst_63 = arith.constant 1.000000e+00 : f32
    %159 = vector.broadcast %cst_63 : f32 to vector<8x64xf32>
    %160 = arith.addf %159, %158 : vector<8x64xf32>
    %161 = arith.mulf %150, %160 : vector<8x64xf32>
    %c0_64 = arith.constant 0 : index
    %c0_65 = arith.constant 0 : index
    %162 = vector.load %arg16[%c0_64, %c0_65] : memref<8x32xf32, #tpu.memory_space<vmem>>, vector<8x32xf32>
    %163 = arith.truncf %161 : vector<8x64xf32> to vector<8x64xbf16>
    %c0_66 = arith.constant 0 : index
    %c0_67 = arith.constant 0 : index
    %164 = vector.load %arg12[%c0_66, %c0_67] : memref<64x32xbf16, #tpu.memory_space<vmem>>, vector<64x32xbf16>
    %cst_68 = arith.constant dense<0.000000e+00> : vector<8x32xf32>
    %165 = tpu.matmul %163, %164, %cst_68 {dimension_numbers = #tpu.dot_dimension_numbers<[1], [0], [0], [1], [0, 0, 1, 1], [], []>} : vector<8x64xbf16>, vector<64x32xbf16>, vector<8x32xf32> -> vector<8x32xf32>
    %166 = arith.addf %162, %165 : vector<8x32xf32>
    %c0_69 = arith.constant 0 : index
    %c0_70 = arith.constant 0 : index
    %167 = vector.load %arg16[%c0_69, %c0_70] : memref<8x32xf32, #tpu.memory_space<vmem>>, vector<8x32xf32>
    tpu.vector_store %arg16[%c0_69, %c0_70], %166 {strides = array<i32>} : memref<8x32xf32, #tpu.memory_space<vmem>>, vector<8x32xf32>,
    %c0_71 = arith.constant 0 : index
    %c0_72 = arith.constant 0 : index
    %168 = vector.load %arg16[%c0_71, %c0_72] : memref<8x32xf32, #tpu.memory_space<vmem>>, vector<8x32xf32>
    %169 = arith.addf %116, %168 : vector<8x32xf32>
    %c0_73 = arith.constant 0 : index
    %c0_74 = arith.constant 0 : index
    %170 = vector.load %arg13[%c0_73, %c0_74] : memref<1x32xf32, #tpu.memory_space<vmem>>, vector<1x32xf32>
    %171 = vector.broadcast %170 : vector<1x32xf32> to vector<8x32xf32>
    %172 = arith.addf %169, %171 : vector<8x32xf32>
    %c0_75 = arith.constant 0 : index
    %c0_76 = arith.constant 0 : index
    %c0_77 = arith.constant 0 : index
    %173 = vector.load %arg14[%c0_75, %c0_76, %c0_77] : memref<1x8x32xf32, #tpu.memory_space<vmem>>, vector<1x8x32xf32>
    %174 = vector.shape_cast %173 : vector<1x8x32xf32> to vector<8x32xf32>
    %175 = vector.shape_cast %172 : vector<8x32xf32> to vector<1x8x32xf32>
    tpu.vector_store %arg14[%c0_75, %c0_76, %c0_77], %175 {strides = array<i32>} : memref<1x8x32xf32, #tpu.memory_space<vmem>>, vector<1x8x32xf32>,
    return
  }
  func.func @transform_0(%arg0: i32) -> (i32, i32, i32) {
    %c0_i32 = arith.constant 0 : i32
    %c0_i32_0 = arith.constant 0 : i32
    %c0_i32_1 = arith.constant 0 : i32
    return %arg0, %c0_i32, %c0_i32_0 : i32, i32, i32
  }
  func.func @transform_1(%arg0: i32) -> (i32, i32) {
    %c0_i32 = arith.constant 0 : i32
    %c0_i32_0 = arith.constant 0 : i32
    %c0_i32_1 = arith.constant 0 : i32
    return %c0_i32, %c0_i32_0 : i32, i32
  }
  func.func @transform_2(%arg0: i32) -> (i32, i32) {
    %c0_i32 = arith.constant 0 : i32
    %c0_i32_0 = arith.constant 0 : i32
    %c0_i32_1 = arith.constant 0 : i32
    return %c0_i32, %c0_i32_0 : i32, i32
  }
  func.func @transform_3(%arg0: i32) -> (i32, i32) {
    %c0_i32 = arith.constant 0 : i32
    %c0_i32_0 = arith.constant 0 : i32
    %c0_i32_1 = arith.constant 0 : i32
    return %c0_i32, %c0_i32_0 : i32, i32
  }
  func.func @transform_4(%arg0: i32) -> (i32, i32) {
    %c0_i32 = arith.constant 0 : i32
    %c0_i32_0 = arith.constant 0 : i32
    %c0_i32_1 = arith.constant 0 : i32
    return %c0_i32, %c0_i32_0 : i32, i32
  }
  func.func @transform_5(%arg0: i32) -> (i32, i32) {
    %c0_i32 = arith.constant 0 : i32
    %c0_i32_0 = arith.constant 0 : i32
    %c0_i32_1 = arith.constant 0 : i32
    return %c0_i32, %c0_i32_0 : i32, i32
  }
  func.func @transform_6(%arg0: i32) -> (i32, i32) {
    %c0_i32 = arith.constant 0 : i32
    %c0_i32_0 = arith.constant 0 : i32
    %c0_i32_1 = arith.constant 0 : i32
    return %c0_i32, %c0_i32_0 : i32, i32
  }
  func.func @transform_7(%arg0: i32) -> (i32, i32) {
    %c0_i32 = arith.constant 0 : i32
    %c0_i32_0 = arith.constant 0 : i32
    %c0_i32_1 = arith.constant 0 : i32
    return %c0_i32, %c0_i32_0 : i32, i32
  }
  func.func @transform_8(%arg0: i32) -> (i32, i32) {
    %c0_i32 = arith.constant 0 : i32
    %c0_i32_0 = arith.constant 0 : i32
    %c0_i32_1 = arith.constant 0 : i32
    return %c0_i32, %c0_i32_0 : i32, i32
  }
  func.func @transform_9(%arg0: i32) -> (i32, i32) {
    %c0_i32 = arith.constant 0 : i32
    %c0_i32_0 = arith.constant 0 : i32
    %c0_i32_1 = arith.constant 0 : i32
    return %c0_i32, %c0_i32_0 : i32, i32
  }
  func.func @transform_10(%arg0: i32) -> (i32, i32) {
    %c0_i32 = arith.constant 0 : i32
    %c0_i32_0 = arith.constant 0 : i32
    %c0_i32_1 = arith.constant 0 : i32
    return %c0_i32, %c0_i32_0 : i32, i32
  }
  func.func @transform_11(%arg0: i32) -> (i32, i32) {
    %c0_i32 = arith.constant 0 : i32
    %c0_i32_0 = arith.constant 0 : i32
    %c0_i32_1 = arith.constant 0 : i32
    return %c0_i32, %c0_i32_0 : i32, i32
  }
  func.func @transform_12(%arg0: i32) -> (i32, i32) {
    %c0_i32 = arith.constant 0 : i32
    %c0_i32_0 = arith.constant 0 : i32
    %c0_i32_1 = arith.constant 0 : i32
    return %c0_i32, %c0_i32_0 : i32, i32
  }
  func.func @transform_13(%arg0: i32) -> (i32, i32, i32) {
    %c0_i32 = arith.constant 0 : i32
    %c0_i32_0 = arith.constant 0 : i32
    %c0_i32_1 = arith.constant 0 : i32
    return %arg0, %c0_i32, %c0_i32_0 : i32, i32, i32
  }
}

</mosaic_0001>

<llo_original>
// kernel: tpu_custom_call.1
$region0: #{tpu_custom_call.1}
  #allocation0 [shape = 'u32[]', space=smem, size = 0x4, offset = 0x4, fixed_abs, tag = 'smem constant byte address 0x4 - core index']
  #allocation1 [shape = 'u32[72,128]{1,0:T(1,128)}', space=vmem, size = 0x9000, scoped, tag = 'internal scratch']
  #allocation2 [shape = 'bf16[8,32]{1,0:T(8,128)(2,1)}', space=vmem, size = 0x800, scoped, tag = 'scratch operand']
  #allocation3 [shape = 'f32[8,32]{1,0:T(8,128)}', space=vmem, size = 0x1000, scoped, tag = 'scratch operand']
  %s0 = inlined_call_operand.vmem [shape: f32[2,8,32], index: 0, kind: input, shape index: {}]
  %s1 = inlined_call_operand.hbm [shape: f32[1,32], index: 1, kind: input, shape index: {}]
  %s2 = inlined_call_operand.vmem [shape: f32[1,32], index: 2, kind: input, shape index: {}]
  %s3 = inlined_call_operand.vmem [shape: bf16[32,96], index: 3, kind: input, shape index: {}]
  %s4 = inlined_call_operand.vmem [shape: f32[1,96], index: 4, kind: input, shape index: {}]
  %s5 = inlined_call_operand.vmem [shape: bf16[32,32], index: 5, kind: input, shape index: {}]
  %s6 = inlined_call_operand.vmem [shape: f32[1,32], index: 6, kind: input, shape index: {}]
  %s7 = inlined_call_operand.vmem [shape: f32[1,32], index: 7, kind: input, shape index: {}]
  %s8 = inlined_call_operand.vmem [shape: f32[1,32], index: 8, kind: input, shape index: {}]
  %s9 = inlined_call_operand.hbm [shape: bf16[32,64], index: 9, kind: input, shape index: {}]
  %s10 = inlined_call_operand.vmem [shape: f32[1,64], index: 10, kind: input, shape index: {}]
  %s11 = inlined_call_operand.vmem [shape: bf16[64,32], index: 11, kind: input, shape index: {}]
  %s12 = inlined_call_operand.vmem [shape: f32[1,32], index: 12, kind: input, shape index: {}]
  %s13 = inlined_call_operand.hbm [shape: f32[2,8,32], index: 13, kind: output, shape index: {}]
  %s14 = sld [smem:[#allocation0]]
  $region93: #{tpu_custom_call.1} parent=0
    _
  %s16 = ssub.s32 1, %s14
  %s17 = scalar_select 0, %s16, %s14
  $region1: #{tpu_custom_call.1} parent=0
    #allocation4 [shape = 'u8[512]{0}', space=vmem, size = 0x400, scoped, tag = 'input window, operand 1, single buffered']
    #allocation5 [shape = 's32[2]{0}', space=sflag, size = 0x8, scoped, tag = 'scoped memory for tpu_custom_call.1']
    #allocation6 [shape = 's32[2]{0}', space=sflag, size = 0x8, scoped, tag = 'scoped memory for tpu_custom_call.1']
    #allocation7 [shape = 'u8[8192]{0}', space=vmem, size = 0x2000, scoped, tag = 'input window, operand 9, single buffered']
    #allocation8 [shape = 's32[1]{0}', space=sflag, size = 0x4, scoped, tag = 'scoped memory for tpu_custom_call.1']
    #allocation9 [shape = 'u8[8192]{0}', space=vmem, size = 0x2000, scoped, tag = 'output window, operand 0']
    %18 = vsyncpa [#allocation5], 0
    %19 = vsyncpa [#allocation8], 0
    %20 = vsyncpa [#allocation6], 0
    %s21 = scalar_lea.sflag [#allocation6], 1
    %22 = vsyncpa %s21, 0
    loop: start=0, step=1, limit=4
    $region2: #{tpu_custom_call.1} parent=1 // loop_pre_header
      _
    $region3: #{tpu_custom_call.1} parent=1 // loop_header
      %s24 = sphi 0, %s28
      %p25 = scmp.ge.s32.totalorder %s24, 4
      %s34 = sphi 0, %s36
      %s37 = sphi 0, %s34
      %s38 = sphi 0, %s37
      %s54 = sphi 0, %s38
      %s58 = sphi 0, %s58
      %s60 = sphi 0, %s58
      %s61 = sphi 0, %s60
      %s75 = sphi 0, %s61
      %s79 = sphi 0, %s79
      %s81 = sphi 0, %s79
      %s82 = sphi 0, %s81
      %s96 = sphi 0, %s82
      %s100 = sphi 0, %s100
      %s102 = sphi 0, %s100
      %s103 = sphi 0, %s102
      %s117 = sphi 0, %s103
      %s121 = sphi 0, %s121
      %s123 = sphi 0, %s121
      %s124 = sphi 0, %s123
      %s138 = sphi 0, %s124
      %s142 = sphi 0, %s142
      %s144 = sphi 0, %s142
      %s145 = sphi 0, %s144
      %s159 = sphi 0, %s145
      %s163 = sphi 0, %s163
      %s165 = sphi 0, %s163
      %s166 = sphi 0, %s165
      %s180 = sphi 0, %s166
      %s184 = sphi 0, %s184
      %s186 = sphi 0, %s184
      %s187 = sphi 0, %s186
      %s201 = sphi 0, %s187
      %s205 = sphi 0, %s205
      %s207 = sphi 0, %s205
      %s208 = sphi 0, %s207
      %s222 = sphi 0, %s208
      %s226 = sphi 0, %s226
      %s228 = sphi 0, %s226
      %s229 = sphi 0, %s228
      %s243 = sphi 0, %s229
      %s247 = sphi 0, %s247
      %s249 = sphi 0, %s247
      %s250 = sphi 0, %s249
      %s264 = sphi 0, %s250
      %s268 = sphi 0, %s268
      %s270 = sphi 0, %s268
      %s271 = sphi 0, %s270
      %s285 = sphi 0, %s271
      %s289 = sphi 0, %s289
      %s291 = sphi 0, %s289
      %s292 = sphi 0, %s291
      %s306 = sphi 0, %s292
      %s312 = sphi 0, %s314
      %s315 = sphi 0, %s312
      %s316 = sphi 0, %s315
      %s332 = sphi 0, %s316
    $region4: #{tpu_custom_call.1} parent=1 // loop_header_branch
      %27 = sbr.rel (%p25) target = $region8
    $region5: #{tpu_custom_call.1} parent=1 // loop_body
      %s29 = ssub.s32 %s24, 1
      %s30 = ssub.s32 %s24, 2
      %s31 = sadd.s32 %s24, 1
      %s32 = ssub.s32 %s24, %s31
      %p33 = scmp.eq.s32.totalorder %s32, 0
      %s35 = sadd.s32 %s34, 1
      %s36 = scalar_select %p33, %s34, %s35
      %p39 = pneg %p33
      %p40 = scmp.eq.s32.totalorder %s24, 1
      %p41 = por %p39, %p40
      %p42 = scmp.ne.s32.totalorder %s34, %s37
      %p43 = scmp.eq.s32.totalorder %s24, 0
      %p44 = por %p42, %p43
      %p45 = scmp.ne.s32.totalorder %s34, %s37
      %p46 = scmp.eq.s32.totalorder %s29, 1
      %p47 = por %p45, %p46
      %p48 = scmp.ne.s32.totalorder %s37, %s38
      %p49 = scmp.eq.s32.totalorder %s29, 0
      %p50 = por %p48, %p49
      %p51 = scmp.ne.s32.totalorder %s37, %s38
      %p52 = scmp.eq.s32.totalorder %s30, 1
      %p53 = por %p51, %p52
      %p55 = scmp.ne.s32.totalorder %s38, %s54
      %p56 = scmp.eq.s32.totalorder %s30, 0
      %p57 = por %p55, %p56
      %s59 = sadd.s32 %s58, 1
      %p62 = scmp.eq.s32.totalorder %s24, 1
      %p63 = scmp.ne.s32.totalorder %s58, %s60
      %p64 = scmp.eq.s32.totalorder %s24, 0
      %p65 = por %p63, %p64
      %p66 = scmp.ne.s32.totalorder %s58, %s60
      %p67 = scmp.eq.s32.totalorder %s29, 1
      %p68 = por %p66, %p67
      %p69 = scmp.ne.s32.totalorder %s60, %s61
      %p70 = scmp.eq.s32.totalorder %s29, 0
      %p71 = por %p69, %p70
      %p72 = scmp.ne.s32.totalorder %s60, %s61
      %p73 = scmp.eq.s32.totalorder %s30, 1
      %p74 = por %p72, %p73
      %p76 = scmp.ne.s32.totalorder %s61, %s75
      %p77 = scmp.eq.s32.totalorder %s30, 0
      %p78 = por %p76, %p77
      %s80 = sadd.s32 %s79, 1
      %p83 = scmp.eq.s32.totalorder %s24, 1
      %p84 = scmp.ne.s32.totalorder %s79, %s81
      %p85 = scmp.eq.s32.totalorder %s24, 0
      %p86 = por %p84, %p85
      %p87 = scmp.ne.s32.totalorder %s79, %s81
      %p88 = scmp.eq.s32.totalorder %s29, 1
      %p89 = por %p87, %p88
      %p90 = scmp.ne.s32.totalorder %s81, %s82
      %p91 = scmp.eq.s32.totalorder %s29, 0
      %p92 = por %p90, %p91
      %p93 = scmp.ne.s32.totalorder %s81, %s82
      %p94 = scmp.eq.s32.totalorder %s30, 1
      %p95 = por %p93, %p94
      %p97 = scmp.ne.s32.totalorder %s82, %s96
      %p98 = scmp.eq.s32.totalorder %s30, 0
      %p99 = por %p97, %p98
      %s101 = sadd.s32 %s100, 1
      %p104 = scmp.eq.s32.totalorder %s24, 1
      %p105 = scmp.ne.s32.totalorder %s100, %s102
      %p106 = scmp.eq.s32.totalorder %s24, 0
      %p107 = por %p105, %p106
      %p108 = scmp.ne.s32.totalorder %s100, %s102
      %p109 = scmp.eq.s32.totalorder %s29, 1
      %p110 = por %p108, %p109
      %p111 = scmp.ne.s32.totalorder %s102, %s103
      %p112 = scmp.eq.s32.totalorder %s29, 0
      %p113 = por %p111, %p112
      %p114 = scmp.ne.s32.totalorder %s102, %s103
      %p115 = scmp.eq.s32.totalorder %s30, 1
      %p116 = por %p114, %p115
      %p118 = scmp.ne.s32.totalorder %s103, %s117
      %p119 = scmp.eq.s32.totalorder %s30, 0
      %p120 = por %p118, %p119
      %s122 = sadd.s32 %s121, 1
      %p125 = scmp.eq.s32.totalorder %s24, 1
      %p126 = scmp.ne.s32.totalorder %s121, %s123
      %p127 = scmp.eq.s32.totalorder %s24, 0
      %p128 = por %p126, %p127
      %p129 = scmp.ne.s32.totalorder %s121, %s123
      %p130 = scmp.eq.s32.totalorder %s29, 1
      %p131 = por %p129, %p130
      %p132 = scmp.ne.s32.totalorder %s123, %s124
      %p133 = scmp.eq.s32.totalorder %s29, 0
      %p134 = por %p132, %p133
      %p135 = scmp.ne.s32.totalorder %s123, %s124
      %p136 = scmp.eq.s32.totalorder %s30, 1
      %p137 = por %p135, %p136
      %p139 = scmp.ne.s32.totalorder %s124, %s138
      %p140 = scmp.eq.s32.totalorder %s30, 0
      %p141 = por %p139, %p140
      %s143 = sadd.s32 %s142, 1
      %p146 = scmp.eq.s32.totalorder %s24, 1
      %p147 = scmp.ne.s32.totalorder %s142, %s144
      %p148 = scmp.eq.s32.totalorder %s24, 0
      %p149 = por %p147, %p148
      %p150 = scmp.ne.s32.totalorder %s142, %s144
      %p151 = scmp.eq.s32.totalorder %s29, 1
      %p152 = por %p150, %p151
      %p153 = scmp.ne.s32.totalorder %s144, %s145
      %p154 = scmp.eq.s32.totalorder %s29, 0
      %p155 = por %p153, %p154
      %p156 = scmp.ne.s32.totalorder %s144, %s145
      %p157 = scmp.eq.s32.totalorder %s30, 1
      %p158 = por %p156, %p157
      %p160 = scmp.ne.s32.totalorder %s145, %s159
      %p161 = scmp.eq.s32.totalorder %s30, 0
      %p162 = por %p160, %p161
      %s164 = sadd.s32 %s163, 1
      %p167 = scmp.eq.s32.totalorder %s24, 1
      %p168 = scmp.ne.s32.totalorder %s163, %s165
      %p169 = scmp.eq.s32.totalorder %s24, 0
      %p170 = por %p168, %p169
      %p171 = scmp.ne.s32.totalorder %s163, %s165
      %p172 = scmp.eq.s32.totalorder %s29, 1
      %p173 = por %p171, %p172
      %p174 = scmp.ne.s32.totalorder %s165, %s166
      %p175 = scmp.eq.s32.totalorder %s29, 0
      %p176 = por %p174, %p175
      %p177 = scmp.ne.s32.totalorder %s165, %s166
      %p178 = scmp.eq.s32.totalorder %s30, 1
      %p179 = por %p177, %p178
      %p181 = scmp.ne.s32.totalorder %s166, %s180
      %p182 = scmp.eq.s32.totalorder %s30, 0
      %p183 = por %p181, %p182
      %s185 = sadd.s32 %s184, 1
      %p188 = scmp.eq.s32.totalorder %s24, 1
      %p189 = scmp.ne.s32.totalorder %s184, %s186
      %p190 = scmp.eq.s32.totalorder %s24, 0
      %p191 = por %p189, %p190
      %p192 = scmp.ne.s32.totalorder %s184, %s186
      %p193 = scmp.eq.s32.totalorder %s29, 1
      %p194 = por %p192, %p193
      %p195 = scmp.ne.s32.totalorder %s186, %s187
      %p196 = scmp.eq.s32.totalorder %s29, 0
      %p197 = por %p195, %p196
      %p198 = scmp.ne.s32.totalorder %s186, %s187
      %p199 = scmp.eq.s32.totalorder %s30, 1
      %p200 = por %p198, %p199
      %p202 = scmp.ne.s32.totalorder %s187, %s201
      %p203 = scmp.eq.s32.totalorder %s30, 0
      %p204 = por %p202, %p203
      %s206 = sadd.s32 %s205, 1
      %p209 = scmp.eq.s32.totalorder %s24, 1
      %p210 = scmp.ne.s32.totalorder %s205, %s207
      %p211 = scmp.eq.s32.totalorder %s24, 0
      %p212 = por %p210, %p211
      %p213 = scmp.ne.s32.totalorder %s205, %s207
      %p214 = scmp.eq.s32.totalorder %s29, 1
      %p215 = por %p213, %p214
      %p216 = scmp.ne.s32.totalorder %s207, %s208
      %p217 = scmp.eq.s32.totalorder %s29, 0
      %p218 = por %p216, %p217
      %p219 = scmp.ne.s32.totalorder %s207, %s208
      %p220 = scmp.eq.s32.totalorder %s30, 1
      %p221 = por %p219, %p220
      %p223 = scmp.ne.s32.totalorder %s208, %s222
      %p224 = scmp.eq.s32.totalorder %s30, 0
      %p225 = por %p223, %p224
      %s227 = sadd.s32 %s226, 1
      %p230 = scmp.eq.s32.totalorder %s24, 1
      %p231 = scmp.ne.s32.totalorder %s226, %s228
      %p232 = scmp.eq.s32.totalorder %s24, 0
      %p233 = por %p231, %p232
      %p234 = scmp.ne.s32.totalorder %s226, %s228
      %p235 = scmp.eq.s32.totalorder %s29, 1
      %p236 = por %p234, %p235
      %p237 = scmp.ne.s32.totalorder %s228, %s229
      %p238 = scmp.eq.s32.totalorder %s29, 0
      %p239 = por %p237, %p238
      %p240 = scmp.ne.s32.totalorder %s228, %s229
      %p241 = scmp.eq.s32.totalorder %s30, 1
      %p242 = por %p240, %p241
      %p244 = scmp.ne.s32.totalorder %s229, %s243
      %p245 = scmp.eq.s32.totalorder %s30, 0
      %p246 = por %p244, %p245
      %s248 = sadd.s32 %s247, 1
      %p251 = scmp.eq.s32.totalorder %s24, 1
      %p252 = scmp.ne.s32.totalorder %s247, %s249
      %p253 = scmp.eq.s32.totalorder %s24, 0
      %p254 = por %p252, %p253
      %p255 = scmp.ne.s32.totalorder %s247, %s249
      %p256 = scmp.eq.s32.totalorder %s29, 1
      %p257 = por %p255, %p256
      %p258 = scmp.ne.s32.totalorder %s249, %s250
      %p259 = scmp.eq.s32.totalorder %s29, 0
      %p260 = por %p258, %p259
      %p261 = scmp.ne.s32.totalorder %s249, %s250
      %p262 = scmp.eq.s32.totalorder %s30, 1
      %p263 = por %p261, %p262
      %p265 = scmp.ne.s32.totalorder %s250, %s264
      %p266 = scmp.eq.s32.totalorder %s30, 0
      %p267 = por %p265, %p266
      %s269 = sadd.s32 %s268, 1
      %p272 = scmp.eq.s32.totalorder %s24, 1
      %p273 = scmp.ne.s32.totalorder %s268, %s270
      %p274 = scmp.eq.s32.totalorder %s24, 0
      %p275 = por %p273, %p274
      %p276 = scmp.ne.s32.totalorder %s268, %s270
      %p277 = scmp.eq.s32.totalorder %s29, 1
      %p278 = por %p276, %p277
      %p279 = scmp.ne.s32.totalorder %s270, %s271
      %p280 = scmp.eq.s32.totalorder %s29, 0
      %p281 = por %p279, %p280
      %p282 = scmp.ne.s32.totalorder %s270, %s271
      %p283 = scmp.eq.s32.totalorder %s30, 1
      %p284 = por %p282, %p283
      %p286 = scmp.ne.s32.totalorder %s271, %s285
      %p287 = scmp.eq.s32.totalorder %s30, 0
      %p288 = por %p286, %p287
      %s290 = sadd.s32 %s289, 1
      %p293 = scmp.eq.s32.totalorder %s24, 1
      %p294 = scmp.ne.s32.totalorder %s289, %s291
      %p295 = scmp.eq.s32.totalorder %s24, 0
      %p296 = por %p294, %p295
      %p297 = scmp.ne.s32.totalorder %s289, %s291
      %p298 = scmp.eq.s32.totalorder %s29, 1
      %p299 = por %p297, %p298
      %p300 = scmp.ne.s32.totalorder %s291, %s292
      %p301 = scmp.eq.s32.totalorder %s29, 0
      %p302 = por %p300, %p301
      %p303 = scmp.ne.s32.totalorder %s291, %s292
      %p304 = scmp.eq.s32.totalorder %s30, 1
      %p305 = por %p303, %p304
      %p307 = scmp.ne.s32.totalorder %s292, %s306
      %p308 = scmp.eq.s32.totalorder %s30, 0
      %p309 = por %p307, %p308
      %s310 = ssub.s32 %s24, %s31
      %p311 = scmp.eq.s32.totalorder %s310, 0
      %s313 = sadd.s32 %s312, 1
      %s314 = scalar_select %p311, %s312, %s313
      %p317 = pneg %p311
      %p318 = scmp.eq.s32.totalorder %s24, 1
      %p319 = por %p317, %p318
      %p320 = scmp.ne.s32.totalorder %s312, %s315
      %p321 = scmp.eq.s32.totalorder %s24, 0
      %p322 = por %p320, %p321
      %p323 = scmp.ne.s32.totalorder %s312, %s315
      %p324 = scmp.eq.s32.totalorder %s29, 1
      %p325 = por %p323, %p324
      %p326 = scmp.ne.s32.totalorder %s315, %s316
      %p327 = scmp.eq.s32.totalorder %s29, 0
      %p328 = por %p326, %p327
      %p329 = scmp.ne.s32.totalorder %s315, %s316
      %p330 = scmp.eq.s32.totalorder %s30, 1
      %p331 = por %p329, %p330
      %p333 = scmp.ne.s32.totalorder %s316, %s332
      %p334 = scmp.eq.s32.totalorder %s30, 0
      %p335 = por %p333, %p334
      %p336 = scmp.le.s32.totalorder 1, %s24
      %p337 = scmp.lt.s32.totalorder %s24, 3
      %p338 = pnand %p336, %p337
      %p339 = pneg %p338
      // Predicated region
      $region9: #{tpu_custom_call.1} parent=5 // pred_check
        _
      $region10: #{tpu_custom_call.1} parent=5 // pred_check_branch
        %341 = sbr.rel (%p338) target = $region12
      $region11: #{tpu_custom_call.1} parent=5 // pred_region
        %s342 = ssub.s32 %s24, 1
        // Predicated region
        $region13: #{tpu_custom_call.1} parent=11 // pred_check
          %p343 = pneg %p71
        $region14: #{tpu_custom_call.1} parent=11 // pred_check_branch
          %345 = sbr.rel (%p343) target = $region16
        $region15: #{tpu_custom_call.1} parent=11 // pred_region
          %347 = vsyncadd [#allocation5], 0
          %s349 = sshll.u32 %s1, 4
          %s350 = int_to_ptr.hbm [resolvable:$true] %s349
          %s351 = sshll.u32 [#allocation4], 4
          %s352 = int_to_ptr.vmem [resolvable:$true] %s351
          %354 = dma.hbm_to_vmem [thread:$0]  %s350, 16, %s352, [#allocation5]
        $region16: #{tpu_custom_call.1} parent=11 // pred_fallthru
          _
        // Predicated region
        $region17: #{tpu_custom_call.1} parent=11 // pred_check
          %p355 = pneg %p92
        $region18: #{tpu_custom_call.1} parent=11 // pred_check_branch
          %357 = sbr.rel (%p355) target = $region20
        $region19: #{tpu_custom_call.1} parent=11 // pred_region
          _
        $region20: #{tpu_custom_call.1} parent=11 // pred_fallthru
          _
        // Predicated region
        $region21: #{tpu_custom_call.1} parent=11 // pred_check
          %p358 = pneg %p113
        $region22: #{tpu_custom_call.1} parent=11 // pred_check_branch
          %360 = sbr.rel (%p358) target = $region24
        $region23: #{tpu_custom_call.1} parent=11 // pred_region
          _
        $region24: #{tpu_custom_call.1} parent=11 // pred_fallthru
          _
        // Predicated region
        $region25: #{tpu_custom_call.1} parent=11 // pred_check
          %p361 = pneg %p134
        $region26: #{tpu_custom_call.1} parent=11 // pred_check_branch
          %363 = sbr.rel (%p361) target = $region28
        $region27: #{tpu_custom_call.1} parent=11 // pred_region
          _
        $region28: #{tpu_custom_call.1} parent=11 // pred_fallthru
          _
        // Predicated region
        $region29: #{tpu_custom_call.1} parent=11 // pred_check
          %p364 = pneg %p155
        $region30: #{tpu_custom_call.1} parent=11 // pred_check_branch
          %366 = sbr.rel (%p364) target = $region32
        $region31: #{tpu_custom_call.1} parent=11 // pred_region
          _
        $region32: #{tpu_custom_call.1} parent=11 // pred_fallthru
          _
        // Predicated region
        $region33: #{tpu_custom_call.1} parent=11 // pred_check
          %p367 = pneg %p176
        $region34: #{tpu_custom_call.1} parent=11 // pred_check_branch
          %369 = sbr.rel (%p367) target = $region36
        $region35: #{tpu_custom_call.1} parent=11 // pred_region
          _
        $region36: #{tpu_custom_call.1} parent=11 // pred_fallthru
          _
        // Predicated region
        $region37: #{tpu_custom_call.1} parent=11 // pred_check
          %p370 = pneg %p197
        $region38: #{tpu_custom_call.1} parent=11 // pred_check_branch
          %372 = sbr.rel (%p370) target = $region40
        $region39: #{tpu_custom_call.1} parent=11 // pred_region
          _
        $region40: #{tpu_custom_call.1} parent=11 // pred_fallthru
          _
        // Predicated region
        $region41: #{tpu_custom_call.1} parent=11 // pred_check
          %p373 = pneg %p218
        $region42: #{tpu_custom_call.1} parent=11 // pred_check_branch
          %375 = sbr.rel (%p373) target = $region44
        $region43: #{tpu_custom_call.1} parent=11 // pred_region
          _
        $region44: #{tpu_custom_call.1} parent=11 // pred_fallthru
          _
        // Predicated region
        $region45: #{tpu_custom_call.1} parent=11 // pred_check
          %p376 = pneg %p239
        $region46: #{tpu_custom_call.1} parent=11 // pred_check_branch
          %378 = sbr.rel (%p376) target = $region48
        $region47: #{tpu_custom_call.1} parent=11 // pred_region
          %380 = vsyncadd [#allocation8], 0
          %s381 = sshll.u32 %s9, 4
          %s382 = int_to_ptr.hbm [resolvable:$true] %s381
          %s383 = sshll.u32 [#allocation7], 4
          %s384 = int_to_ptr.vmem [resolvable:$true] %s383
          %389 = dma.hbm_to_vmem [thread:$0]  %s382, 256, %s384, [#allocation8], 64, 64, 4
        $region48: #{tpu_custom_call.1} parent=11 // pred_fallthru
          _
        // Predicated region
        $region49: #{tpu_custom_call.1} parent=11 // pred_check
          %p390 = pneg %p260
        $region50: #{tpu_custom_call.1} parent=11 // pred_check_branch
          %392 = sbr.rel (%p390) target = $region52
        $region51: #{tpu_custom_call.1} parent=11 // pred_region
          _
        $region52: #{tpu_custom_call.1} parent=11 // pred_fallthru
          _
        // Predicated region
        $region53: #{tpu_custom_call.1} parent=11 // pred_check
          %p393 = pneg %p281
        $region54: #{tpu_custom_call.1} parent=11 // pred_check_branch
          %395 = sbr.rel (%p393) target = $region56
        $region55: #{tpu_custom_call.1} parent=11 // pred_region
          _
        $region56: #{tpu_custom_call.1} parent=11 // pred_fallthru
          _
        // Predicated region
        $region57: #{tpu_custom_call.1} parent=11 // pred_check
          %p396 = pneg %p302
        $region58: #{tpu_custom_call.1} parent=11 // pred_check_branch
          %398 = sbr.rel (%p396) target = $region60
        $region59: #{tpu_custom_call.1} parent=11 // pred_region
          _
        $region60: #{tpu_custom_call.1} parent=11 // pred_fallthru
          _
      $region12: #{tpu_custom_call.1} parent=5 // pred_fallthru
        _
      %p399 = scmp.lt.s32.totalorder %s24, 2
      // Predicated region
      $region61: #{tpu_custom_call.1} parent=5 // pred_check
        %p400 = pneg %p399
      $region62: #{tpu_custom_call.1} parent=5 // pred_check_branch
        %402 = sbr.rel (%p400) target = $region64
      $region63: #{tpu_custom_call.1} parent=5 // pred_region
        // Predicated region
        $region65: #{tpu_custom_call.1} parent=63 // pred_check
          %p403 = pneg %p44
        $region66: #{tpu_custom_call.1} parent=63 // pred_check_branch
          %405 = sbr.rel (%p403) target = $region68
        $region67: #{tpu_custom_call.1} parent=63 // pred_region
          %p406 = scmp.lt.s32.totalorder %s24, 1
          %s407 = scalar_select %p406, %s24, 1
          %s408 = smul.addr %s407, 8
          %s409 = scalar_lea.vmem %s0, %s408
        $region68: #{tpu_custom_call.1} parent=63 // pred_fallthru
          _
      $region64: #{tpu_custom_call.1} parent=5 // pred_fallthru
        _
      %p410 = scmp.le.s32.totalorder 1, %s24
      %p411 = scmp.lt.s32.totalorder %s24, 3
      %p412 = pnand %p410, %p411
      %p413 = pneg %p412
      // Predicated region
      $region69: #{tpu_custom_call.1} parent=5 // pred_check
        _
      $region70: #{tpu_custom_call.1} parent=5 // pred_check_branch
        %415 = sbr.rel (%p412) target = $region72
      $region71: #{tpu_custom_call.1} parent=5 // pred_region
        %s416 = ssub.s32 %s24, 1
        // Predicated region
        $region73: #{tpu_custom_call.1} parent=71 // pred_check
          %p417 = pneg %p71
        $region74: #{tpu_custom_call.1} parent=71 // pred_check_branch
          %419 = sbr.rel (%p417) target = $region76
        $region75: #{tpu_custom_call.1} parent=71 // pred_region
          %421 = dma.done [#allocation5], 16
        $region76: #{tpu_custom_call.1} parent=71 // pred_fallthru
          _
        // Predicated region
        $region77: #{tpu_custom_call.1} parent=71 // pred_check
          %p422 = pneg %p239
        $region78: #{tpu_custom_call.1} parent=71 // pred_check_branch
          %424 = sbr.rel (%p422) target = $region80
        $region79: #{tpu_custom_call.1} parent=71 // pred_region
          %426 = dma.done [#allocation8], 256
        $region80: #{tpu_custom_call.1} parent=71 // pred_fallthru
          _
        %p427 = scmp.lt.s32.totalorder %s29, 1
        %s428 = scalar_select %p427, %s29, 1
        %s429 = smul.addr %s428, 8
        %s430 = scalar_lea.vmem %s0, %s429
        %p431 = pneg %p50
        %p432 = pneg %p47
        %p433 = pneg %p71
        %p434 = pneg %p68
        %p435 = pneg %p92
        %p436 = pneg %p89
        %p437 = pneg %p113
        %p438 = pneg %p110
        %p439 = pneg %p134
        %p440 = pneg %p131
        %p441 = pneg %p155
        %p442 = pneg %p152
        %p443 = pneg %p176
        %p444 = pneg %p173
        %p445 = pneg %p197
        %p446 = pneg %p194
        %p447 = pneg %p218
        %p448 = pneg %p215
        %p449 = pneg %p239
        %p450 = pneg %p236
        %p451 = pneg %p260
        %p452 = pneg %p257
        %p453 = pneg %p281
        %p454 = pneg %p278
        %p455 = pneg %p302
        %p456 = pneg %p299
        %p457 = pneg %p328
        %p458 = pneg %p325
        %s459 = sand.u32 %s315, 1
        %s460 = scalar_lea.sflag [#allocation6], %s459
        %s461 = sand.u32 %s315, 1
        %s462 = smul.addr %s461, 8
        %s463 = scalar_lea.vmem [#allocation9], %s462
        %p464 = scmp.lt.s32.totalorder %s29, 1
        %s465 = scalar_select %p464, %s29, 1
        %s466 = smul.addr %s465, 8
        %s467 = scalar_lea.vmem %s0, %s466
        %v469 = vld [vmem:[%s467] sm:$0xff]
        %v470 = vld [vmem:[#allocation4] sm:$0x1]
        %v471 = vld [vmem:[%s2] sm:$0x1]
        %vm472 = vcmask 261120
        %v473 = vsel %vm472, %v469, 0.0
        %474 = vadd.xlane.f32.xlu0 %v473
        %v475 = vpop.xlane.xlu0 %474
        %v476 = vrcp.pop 32.0
        %v477 = vmul.f32 32.0, %v476
        %v478 = vsub.f32 1.0, %v477
        %v479 = vmul.f32 %v476, %v478
        %v480 = vadd.f32 %v476, %v479
        %vm481 = vweird.f32 %v476
        %v482 = vsel %vm481, %v476, %v480
        %v483 = vmul.f32 %v475, %v482
        %v484 = vsub.f32 %v469, %v483
        %v485 = vmul.f32 %v484, %v484
        %v486 = vsel %vm472, %v485, 0.0
        %487 = vadd.xlane.f32.xlu0 %v486
        %v488 = vpop.xlane.xlu0 %487
        %v489 = vmul.f32 %v488, %v482
        %v490 = vadd.f32 %v489, 1e-06
        %v491 = vrsqrt.pop %v490
        %v492 = vmul.f32 %v491, %v490
        %v493 = vmul.f32 %v492, %v491
        %v494 = vmul.f32 0.5, %v493
        %v495 = vsub.f32 1.5, %v494
        %v496 = vmul.f32 %v491, %v495
        %vm497 = vweird.f32 %v490
        %vm498 = vweird.f32 %v491
        %vm499 = vmor %vm497, %vm498
        %v500 = vsel %vm499, %v491, %v496
        %v501 = vmul.f32 %v484, %v500
        %v503 = vperm.slane %v470, 0
        %v505 = vmul.f32 %v501, %v503
        %v507 = vperm.slane %v471, 0
        %v509 = vadd.f32 %v505, %v507
        %v510 = vpack.c.bf16 %v509, %v509
        %v511 = vld [vmem:[%s3] sm:$0xf]
        %v512 = vld [vmem:[%s3 + $0x4] sm:$0xf]
        %v513 = vld [vmem:[%s3 + $0x8] sm:$0xf]
        %v514 = vld [vmem:[%s3 + $0xc] sm:$0xf]
        %v515 = vld [vmem:[%s4] sm:$0x1]
        %v517 = vperm.slane %v515, 0
        %v523 = vunpack.c.l.b16 %v511
        %v524 = vunpack.c.l.b16 %v512
        %v525 = vunpack.c.l.b16 %v513
        %v526 = vunpack.c.l.b16 %v514
        %v527 = vpack.c.b16 %v524, %v523
        %v528 = vpack.c.b16 %v526, %v525
        %v532 = vsel %vm472, %v510, 0
        %534 = vmatpush.bf16.msra.mxu0 0
        %535 = vmatpush.bf16.msra.mxu0 0
        %536 = vmatpush.bf16.msra.mxu0 0
        %537 = vmatpush.bf16.msra.mxu0 0
        %538 = vmatpush.bf16.msra.mxu0 0
        %539 = vmatpush.bf16.msra.mxu0 0
        %540 = vmatpush.bf16.msra.mxu0 %v528
        %541 = vmatpush.bf16.msra.mxu0 %v527
        %542 = vmatmul.bf16.gmra.mxu0 %v532
        %v543 = vpop.f32.mrf.mxu0
        %v544 = vadd.f32 %v517, %v543
        %v545 = vpop.f32.mrf.mxu0
        %546 = vdwg.mxu0
        %v547 = vpack.c.bf16 %v544, %v544
        %v549 = vunpack.c.l.b16 %v547
        %v550 = vpack.c.b16 %v549, %v549
        %551 = vrot.lane.b32.xlu0 %v550, 96
        %v552 = vpop.permute.xlu0 %551
        %vm553 = vcmask 64512
        %v555 = vsel %vm553, %v547, 0
        %v558 = vsel %vm553, %v552, 0
        %560 = vmatpush.bf16.xpose.msra.mxu0 0
        %561 = vmatpush.bf16.xpose.msra.mxu0 0
        %562 = vmatpush.bf16.xpose.msra.mxu0 0
        %563 = vmatpush.bf16.xpose.msra.mxu0 0
        %564 = vmatpush.bf16.xpose.msra.mxu0 0
        %565 = vmatpush.bf16.xpose.msra.mxu0 0
        %566 = vmatpush.bf16.xpose.msra.mxu0 0
        %567 = vmatpush.bf16.xpose.msra.mxu0 %v558
        %568 = vmatmul.bf16.gmra.mxu0 %v555
        %v569 = vpop.f32.mrf.mxu0
        %v570 = vadd.f32 0.0, %v569
        %v571 = vpop.f32.mrf.mxu0
        %572 = vdwg.mxu0
        %v573 = vsel %vm553, %v570, -inf
        %574 = vmax.xlane.f32.xlu0 %v573
        %v575 = vpop.xlane.xlu0 %574
        %v576 = vsub.f32 %v570, %v575
        %v577 = vmul.f32 %v576, 1.442695
        %v578 = vpow.pop %v577
        %v579 = vsel %vm553, %v578, 0.0
        %580 = vadd.xlane.f32.xlu0 %v579
        %v581 = vpop.xlane.xlu0 %580
        %v582 = vpack.c.bf16 %v578, %v578
        %583 = vrot.lane.b32.xlu0 %v550, 64
        %v584 = vpop.permute.xlu0 %583
        %v586 = vsel %vm553, %v582, 0
        %vm588 = vcmask 1043456
        %v590 = vsel %vm588, %v584, 0
        %592 = vmatpush.bf16.msra.mxu0 0
        %593 = vmatpush.bf16.msra.mxu0 0
        %594 = vmatpush.bf16.msra.mxu0 0
        %595 = vmatpush.bf16.msra.mxu0 0
        %596 = vmatpush.bf16.msra.mxu0 0
        %597 = vmatpush.bf16.msra.mxu0 0
        %598 = vmatpush.bf16.msra.mxu0 0
        %599 = vmatpush.bf16.msra.mxu0 %v590
        %600 = vmatmul.bf16.gmra.mxu0 %v586
        %v601 = vpop.f32.mrf.mxu0
        %v602 = vadd.f32 0.0, %v601
        %v603 = vpop.f32.mrf.mxu0
        %604 = vdwg.mxu0
        %v605 = vrcp.pop %v581
        %v606 = vmul.f32 %v602, %v605
        %v607 = vpack.c.bf16 %v606, %v606
        %vm608 = vcmask 60416
        %609 = vst.msk [vmem:[#allocation2] sm:$0xf] %vm608, %v607
        %610 = vrot.lane.b32.xlu0 %v550, 120
        %v611 = vpop.permute.xlu0 %610
        %612 = vrot.lane.b32.xlu0 %v550, 88
        %v613 = vpop.permute.xlu0 %612
        %v615 = vsel %vm553, %v611, 0
        %v618 = vsel %vm553, %v613, 0
        %620 = vmatpush.bf16.xpose.msra.mxu0 0
        %621 = vmatpush.bf16.xpose.msra.mxu0 0
        %622 = vmatpush.bf16.xpose.msra.mxu0 0
        %623 = vmatpush.bf16.xpose.msra.mxu0 0
        %624 = vmatpush.bf16.xpose.msra.mxu0 0
        %625 = vmatpush.bf16.xpose.msra.mxu0 0
        %626 = vmatpush.bf16.xpose.msra.mxu0 0
        %627 = vmatpush.bf16.xpose.msra.mxu0 %v618
        %628 = vmatmul.bf16.gmra.mxu0 %v615
        %v629 = vpop.f32.mrf.mxu0
        %v630 = vadd.f32 0.0, %v629
        %v631 = vpop.f32.mrf.mxu0
        %632 = vdwg.mxu0
        %v633 = vsel %vm553, %v630, -inf
        %634 = vmax.xlane.f32.xlu0 %v633
        %v635 = vpop.xlane.xlu0 %634
        %v636 = vsub.f32 %v630, %v635
        %v637 = vmul.f32 %v636, 1.442695
        %v638 = vpow.pop %v637
        %v639 = vsel %vm553, %v638, 0.0
        %640 = vadd.xlane.f32.xlu0 %v639
        %v641 = vpop.xlane.xlu0 %640
        %v642 = vpack.c.bf16 %v638, %v638
        %643 = vrot.lane.b32.xlu0 %v550, 56
        %v644 = vpop.permute.xlu0 %643
        %v646 = vsel %vm553, %v642, 0
        %v649 = vsel %vm588, %v644, 0
        %651 = vmatpush.bf16.msra.mxu0 0
        %652 = vmatpush.bf16.msra.mxu0 0
        %653 = vmatpush.bf16.msra.mxu0 0
        %654 = vmatpush.bf16.msra.mxu0 0
        %655 = vmatpush.bf16.msra.mxu0 0
        %656 = vmatpush.bf16.msra.mxu0 0
        %657 = vmatpush.bf16.msra.mxu0 0
        %658 = vmatpush.bf16.msra.mxu0 %v649
        %659 = vmatmul.bf16.gmra.mxu0 %v646
        %v660 = vpop.f32.mrf.mxu0
        %v661 = vadd.f32 0.0, %v660
        %v662 = vpop.f32.mrf.mxu0
        %663 = vdwg.mxu0
        %v664 = vrcp.pop %v641
        %v665 = vmul.f32 %v661, %v664
        %v666 = vpack.c.bf16 %v665, %v665
        %668 = vrot.lane.b32.xlu0 %v666, 8
        %v669 = vpop.permute.xlu0 %668
        %vm671 = vcmask 126016
        %672 = vst.msk [vmem:[#allocation2] sm:$0xf] %vm671, %v669
        %673 = vrot.lane.b32.xlu0 %v550, 112
        %v674 = vpop.permute.xlu0 %673
        %675 = vrot.lane.b32.xlu0 %v550, 80
        %v676 = vpop.permute.xlu0 %675
        %v678 = vsel %vm553, %v674, 0
        %v681 = vsel %vm553, %v676, 0
        %683 = vmatpush.bf16.xpose.msra.mxu0 0
        %684 = vmatpush.bf16.xpose.msra.mxu0 0
        %685 = vmatpush.bf16.xpose.msra.mxu0 0
        %686 = vmatpush.bf16.xpose.msra.mxu0 0
        %687 = vmatpush.bf16.xpose.msra.mxu0 0
        %688 = vmatpush.bf16.xpose.msra.mxu0 0
        %689 = vmatpush.bf16.xpose.msra.mxu0 0
        %690 = vmatpush.bf16.xpose.msra.mxu0 %v681
        %691 = vmatmul.bf16.gmra.mxu0 %v678
        %v692 = vpop.f32.mrf.mxu0
        %v693 = vadd.f32 0.0, %v692
        %v694 = vpop.f32.mrf.mxu0
        %695 = vdwg.mxu0
        %v696 = vsel %vm553, %v693, -inf
        %697 = vmax.xlane.f32.xlu0 %v696
        %v698 = vpop.xlane.xlu0 %697
        %v699 = vsub.f32 %v693, %v698
        %v700 = vmul.f32 %v699, 1.442695
        %v701 = vpow.pop %v700
        %v702 = vsel %vm553, %v701, 0.0
        %703 = vadd.xlane.f32.xlu0 %v702
        %v704 = vpop.xlane.xlu0 %703
        %v705 = vpack.c.bf16 %v701, %v701
        %706 = vrot.lane.b32.xlu0 %v550, 48
        %v707 = vpop.permute.xlu0 %706
        %v709 = vsel %vm553, %v705, 0
        %v712 = vsel %vm588, %v707, 0
        %714 = vmatpush.bf16.msra.mxu0 0
        %715 = vmatpush.bf16.msra.mxu0 0
        %716 = vmatpush.bf16.msra.mxu0 0
        %717 = vmatpush.bf16.msra.mxu0 0
        %718 = vmatpush.bf16.msra.mxu0 0
        %719 = vmatpush.bf16.msra.mxu0 0
        %720 = vmatpush.bf16.msra.mxu0 0
        %721 = vmatpush.bf16.msra.mxu0 %v712
        %722 = vmatmul.bf16.gmra.mxu0 %v709
        %v723 = vpop.f32.mrf.mxu0
        %v724 = vadd.f32 0.0, %v723
        %v725 = vpop.f32.mrf.mxu0
        %726 = vdwg.mxu0
        %v727 = vrcp.pop %v704
        %v728 = vmul.f32 %v724, %v727
        %v729 = vpack.c.bf16 %v728, %v728
        %731 = vrot.lane.b32.xlu0 %v729, 16
        %v732 = vpop.permute.xlu0 %731
        %vm734 = vcmask 191616
        %735 = vst.msk [vmem:[#allocation2] sm:$0xf] %vm734, %v732
        %736 = vrot.lane.b32.xlu0 %v550, 104
        %v737 = vpop.permute.xlu0 %736
        %738 = vrot.lane.b32.xlu0 %v550, 72
        %v739 = vpop.permute.xlu0 %738
        %v741 = vsel %vm553, %v737, 0
        %v744 = vsel %vm553, %v739, 0
        %746 = vmatpush.bf16.xpose.msra.mxu0 0
        %747 = vmatpush.bf16.xpose.msra.mxu0 0
        %748 = vmatpush.bf16.xpose.msra.mxu0 0
        %749 = vmatpush.bf16.xpose.msra.mxu0 0
        %750 = vmatpush.bf16.xpose.msra.mxu0 0
        %751 = vmatpush.bf16.xpose.msra.mxu0 0
        %752 = vmatpush.bf16.xpose.msra.mxu0 0
        %753 = vmatpush.bf16.xpose.msra.mxu0 %v744
        %754 = vmatmul.bf16.gmra.mxu0 %v741
        %v755 = vpop.f32.mrf.mxu0
        %v756 = vadd.f32 0.0, %v755
        %v757 = vpop.f32.mrf.mxu0
        %758 = vdwg.mxu0
        %v759 = vsel %vm553, %v756, -inf
        %760 = vmax.xlane.f32.xlu0 %v759
        %v761 = vpop.xlane.xlu0 %760
        %v762 = vsub.f32 %v756, %v761
        %v763 = vmul.f32 %v762, 1.442695
        %v764 = vpow.pop %v763
        %v765 = vsel %vm553, %v764, 0.0
        %766 = vadd.xlane.f32.xlu0 %v765
        %v767 = vpop.xlane.xlu0 %766
        %v768 = vpack.c.bf16 %v764, %v764
        %769 = vrot.lane.b32.xlu0 %v550, 40
        %v770 = vpop.permute.xlu0 %769
        %v772 = vsel %vm553, %v768, 0
        %v775 = vsel %vm588, %v770, 0
        %777 = vmatpush.bf16.msra.mxu0 0
        %778 = vmatpush.bf16.msra.mxu0 0
        %779 = vmatpush.bf16.msra.mxu0 0
        %780 = vmatpush.bf16.msra.mxu0 0
        %781 = vmatpush.bf16.msra.mxu0 0
        %782 = vmatpush.bf16.msra.mxu0 0
        %783 = vmatpush.bf16.msra.mxu0 0
        %784 = vmatpush.bf16.msra.mxu0 %v775
        %785 = vmatmul.bf16.gmra.mxu0 %v772
        %v786 = vpop.f32.mrf.mxu0
        %v787 = vadd.f32 0.0, %v786
        %v788 = vpop.f32.mrf.mxu0
        %789 = vdwg.mxu0
        %v790 = vrcp.pop %v767
        %v791 = vmul.f32 %v787, %v790
        %v792 = vpack.c.bf16 %v791, %v791
        %794 = vrot.lane.b32.xlu0 %v792, 24
        %v795 = vpop.permute.xlu0 %794
        %vm797 = vcmask 257216
        %798 = vst.msk [vmem:[#allocation2] sm:$0xf] %vm797, %v795
        %v799 = vld [vmem:[#allocation2] sm:$0xf]
        %v800 = vld [vmem:[%s5] sm:$0xf]
        %v801 = vld [vmem:[%s5 + $0x4] sm:$0xf]
        %v802 = vld [vmem:[%s5 + $0x8] sm:$0xf]
        %v803 = vld [vmem:[%s5 + $0xc] sm:$0xf]
        %v804 = vld [vmem:[%s6] sm:$0x1]
        %v806 = vperm.slane %v804, 0
        %v812 = vunpack.c.l.b16 %v800
        %v813 = vunpack.c.l.b16 %v801
        %v814 = vunpack.c.l.b16 %v802
        %v815 = vunpack.c.l.b16 %v803
        %v816 = vpack.c.b16 %v813, %v812
        %v817 = vpack.c.b16 %v815, %v814
        %v821 = vsel %vm472, %v799, 0
        %823 = vmatpush.bf16.msra.mxu0 0
        %824 = vmatpush.bf16.msra.mxu0 0
        %825 = vmatpush.bf16.msra.mxu0 0
        %826 = vmatpush.bf16.msra.mxu0 0
        %827 = vmatpush.bf16.msra.mxu0 0
        %828 = vmatpush.bf16.msra.mxu0 0
        %829 = vmatpush.bf16.msra.mxu0 %v817
        %830 = vmatpush.bf16.msra.mxu0 %v816
        %831 = vmatmul.bf16.gmra.mxu0 %v821
        %v832 = vpop.f32.mrf.mxu0
        %v833 = vadd.f32 %v806, %v832
        %v834 = vpop.f32.mrf.mxu0
        %835 = vdwg.mxu0
        %v836 = vadd.f32 %v469, %v833
        %v837 = vld [vmem:[%s7] sm:$0x1]
        %v838 = vld [vmem:[%s8] sm:$0x1]
        %v839 = vsel %vm472, %v836, 0.0
        %840 = vadd.xlane.f32.xlu0 %v839
        %v841 = vpop.xlane.xlu0 %840
        %v842 = vmul.f32 %v841, %v482
        %v843 = vsub.f32 %v836, %v842
        %v844 = vmul.f32 %v843, %v843
        %v845 = vsel %vm472, %v844, 0.0
        %846 = vadd.xlane.f32.xlu0 %v845
        %v847 = vpop.xlane.xlu0 %846
        %v848 = vmul.f32 %v847, %v482
        %v849 = vadd.f32 %v848, 1e-06
        %v850 = vrsqrt.pop %v849
        %v851 = vmul.f32 %v850, %v849
        %v852 = vmul.f32 %v851, %v850
        %v853 = vmul.f32 0.5, %v852
        %v854 = vsub.f32 1.5, %v853
        %v855 = vmul.f32 %v850, %v854
        %vm856 = vweird.f32 %v849
        %vm857 = vweird.f32 %v850
        %vm858 = vmor %vm856, %vm857
        %v859 = vsel %vm858, %v850, %v855
        %v860 = vmul.f32 %v843, %v859
        %v862 = vperm.slane %v837, 0
        %v864 = vmul.f32 %v860, %v862
        %v866 = vperm.slane %v838, 0
        %v868 = vadd.f32 %v864, %v866
        %v869 = vpack.c.bf16 %v868, %v868
        %870 = vst.msk [vmem:[#allocation3] sm:$0xff] %vm472, 0.0
        %v871 = vld [vmem:[#allocation7] sm:$0xf]
        %v872 = vld [vmem:[#allocation7 + $0x4] sm:$0xf]
        %v873 = vld [vmem:[#allocation7 + $0x8] sm:$0xf]
        %v874 = vld [vmem:[#allocation7 + $0xc] sm:$0xf]
        %v875 = vld [vmem:[%s10] sm:$0x1]
        %v877 = vperm.slane %v875, 0
        %v883 = vunpack.c.l.b16 %v871
        %v884 = vunpack.c.l.b16 %v872
        %v885 = vunpack.c.l.b16 %v873
        %v886 = vunpack.c.l.b16 %v874
        %v887 = vpack.c.b16 %v884, %v883
        %v888 = vpack.c.b16 %v886, %v885
        %v892 = vsel %vm472, %v869, 0
        %894 = vmatpush.bf16.msra.mxu0 0
        %895 = vmatpush.bf16.msra.mxu0 0
        %896 = vmatpush.bf16.msra.mxu0 0
        %897 = vmatpush.bf16.msra.mxu0 0
        %898 = vmatpush.bf16.msra.mxu0 0
        %899 = vmatpush.bf16.msra.mxu0 0
        %900 = vmatpush.bf16.msra.mxu0 %v888
        %901 = vmatpush.bf16.msra.mxu0 %v887
        %902 = vmatmul.bf16.gmra.mxu0 %v892
        %v903 = vpop.f32.mrf.mxu0
        %v904 = vadd.f32 %v877, %v903
        %v905 = vpop.f32.mrf.mxu0
        %906 = vdwg.mxu0
        %v907 = vmul.f32 %v904, 0.5
        %v908 = vmul.f32 %v904, 0.044715
        %v909 = vmul.f32 %v908, %v904
        %v910 = vmul.f32 %v909, %v904
        %v911 = vadd.f32 %v904, %v910
        %v912 = vmul.f32 %v911, 0.7978846
        %v913 = vtanh.pop %v912
        %v914 = vadd.f32 %v913, 1.0
        %v915 = vmul.f32 %v907, %v914
        %v916 = vld [vmem:[#allocation3] sm:$0xff]
        %v917 = vpack.c.bf16 %v915, %v915
        %v918 = vld [vmem:[%s11] sm:$0xf]
        %v919 = vld [vmem:[%s11 + $0x4] sm:$0xf]
        %v920 = vld [vmem:[%s11 + $0x8] sm:$0xf]
        %v921 = vld [vmem:[%s11 + $0xc] sm:$0xf]
        %v922 = vld [vmem:[%s11 + $0x10] sm:$0xf]
        %v923 = vld [vmem:[%s11 + $0x14] sm:$0xf]
        %v924 = vld [vmem:[%s11 + $0x18] sm:$0xf]
        %v925 = vld [vmem:[%s11 + $0x1c] sm:$0xf]
        %v934 = vunpack.c.l.b16 %v918
        %v935 = vunpack.c.l.b16 %v919
        %v936 = vunpack.c.l.b16 %v920
        %v937 = vunpack.c.l.b16 %v921
        %v938 = vunpack.c.l.b16 %v922
        %v939 = vunpack.c.l.b16 %v923
        %v940 = vunpack.c.l.b16 %v924
        %v941 = vunpack.c.l.b16 %v925
        %v942 = vpack.c.b16 %v935, %v934
        %v943 = vpack.c.b16 %v937, %v936
        %v944 = vpack.c.b16 %v939, %v938
        %v945 = vpack.c.b16 %v941, %v940
        %vm950 = vcmask 523264
        %v952 = vsel %vm950, %v917, 0
        %954 = vmatpush.bf16.msra.mxu0 0
        %955 = vmatpush.bf16.msra.mxu0 0
        %956 = vmatpush.bf16.msra.mxu0 0
        %957 = vmatpush.bf16.msra.mxu0 0
        %958 = vmatpush.bf16.msra.mxu0 %v945
        %959 = vmatpush.bf16.msra.mxu0 %v944
        %960 = vmatpush.bf16.msra.mxu0 %v943
        %961 = vmatpush.bf16.msra.mxu0 %v942
        %962 = vmatmul.bf16.gmra.mxu0 %v952
        %v963 = vpop.f32.mrf.mxu0
        %v964 = vadd.f32 0.0, %v963
        %v965 = vpop.f32.mrf.mxu0
        %966 = vdwg.mxu0
        %v967 = vadd.f32 %v916, %v964
        %968 = vst.msk [vmem:[#allocation3] sm:$0xff] %vm472, %v967
        %v969 = vld [vmem:[#allocation3] sm:$0xff]
        %v970 = vadd.f32 %v836, %v969
        %v971 = vld [vmem:[%s12] sm:$0x1]
        %v973 = vperm.slane %v971, 0
        %v975 = vadd.f32 %v970, %v973
        %976 = vst.msk [vmem:[%s463] sm:$0xff] %vm472, %v975
        %s977 = sand.u32 %s315, 1
        %s978 = scalar_lea.sflag [#allocation6], %s977
        %s979 = sand.u32 %s315, 1
        %s980 = smul.addr %s979, 8
        %s981 = scalar_lea.vmem [#allocation9], %s980
        // Predicated region
        $region81: #{tpu_custom_call.1} parent=71 // pred_check
          %p982 = pneg %p325
        $region82: #{tpu_custom_call.1} parent=71 // pred_check_branch
          %984 = sbr.rel (%p982) target = $region84
        $region83: #{tpu_custom_call.1} parent=71 // pred_region
          %986 = vsyncadd %s978, 0
          %s987 = smul.addr %s29, 8
          %s988 = scalar_lea.hbm %s13, %s987
          %s990 = sshll.u32 %s981, 4
          %s991 = int_to_ptr.vmem [resolvable:$true] %s990
          %s992 = sshll.u32 %s988, 4
          %s993 = int_to_ptr.hbm [resolvable:$true] %s992
          %995 = dma.vmem_to_hbm [thread:$0]  %s991, 128, %s993, %s978
        $region84: #{tpu_custom_call.1} parent=71 // pred_fallthru
          _
      $region72: #{tpu_custom_call.1} parent=5 // pred_fallthru
        _
      %p996 = scmp.le.s32.totalorder 2, %s24
      // Predicated region
      $region85: #{tpu_custom_call.1} parent=5 // pred_check
        %p997 = pneg %p996
      $region86: #{tpu_custom_call.1} parent=5 // pred_check_branch
        %999 = sbr.rel (%p997) target = $region88
      $region87: #{tpu_custom_call.1} parent=5 // pred_region
        %s1000 = ssub.s32 %s24, 2
        // Predicated region
        $region89: #{tpu_custom_call.1} parent=87 // pred_check
          %p1001 = pneg %p331
        $region90: #{tpu_custom_call.1} parent=87 // pred_check_branch
          %1003 = sbr.rel (%p1001) target = $region92
        $region91: #{tpu_custom_call.1} parent=87 // pred_region
          %s1004 = sand.u32 %s316, 1
          %s1005 = scalar_lea.sflag [#allocation6], %s1004
          %s1006 = sand.u32 %s316, 1
          %s1007 = smul.addr %s1006, 8
          %s1008 = scalar_lea.vmem [#allocation9], %s1007
          %1010 = dma.done %s1005, 128
        $region92: #{tpu_custom_call.1} parent=87 // pred_fallthru
          _
      $region88: #{tpu_custom_call.1} parent=5 // pred_fallthru
        _
    $region6: #{tpu_custom_call.1} parent=1 // loop_footer
      %s28 = sadd.s32 1, %s24
    $region7: #{tpu_custom_call.1} parent=1 // loop_footer_branch
      %23 = sbr.rel target = $region3
    $region8: #{tpu_custom_call.1} parent=1 // loop_exit
      _
    %1011 = vsyncpa [#allocation5], 1
    %s1012 = scalar_lea.sflag [#allocation5], 1
    %1013 = vsyncpa %s1012, 1
    %1014 = vsyncpa [#allocation8], 1
    %1015 = vsyncpa [#allocation6], 1
    %s1016 = scalar_lea.sflag [#allocation6], 1
    %1017 = vsyncpa %s1016, 1

</llo_original>
